<compile_context>
chip_gen: v7x
topology: tpu7x:2x2x1
jax: 0.10.0
libtpu: 0.0.40
codegen_flags: <defaults>
</compile_context>

<pallas_src>
import functools

import jax
import jax.numpy as jnp
from jax import lax
from jax.experimental import pallas as pl
from jax.experimental.pallas import tpu as pltpu


# ----------------------------------------------------------------------------
# Kernels: one grid step == one (batch block, time block) tile.
# Grid = (B // b_blk, S_pad // t_blk), time axis innermost / sequential.
# ----------------------------------------------------------------------------
def _rhn_kernel_tied(htc_ref,      # (t_blk, b_blk, 3*hid) fused precomputed projections
                     h0_ref,       # (b_blk, hid)          initial hidden state (this batch blk)
                     smask_ref,    # (b_blk, hid)          hidden dropout mask (tied)
                     wht_ref,      # (depth, hid, 2*hid)   fused [Wh | Wt]
                     bht_ref,      # (depth, 1, 2*hid)     fused [bh | bt] (f32)
                     out_ref,      # (t_blk, b_blk, hid)
                     state_ref,    # scratch (b_blk, hid) f32 persistent state
                     *, depth, hid, t_blk, unroll):
    @pl.when(pl.program_id(1) == 0)          # first time-block of this batch block
    def _():
        state_ref[...] = h0_ref[...].astype(jnp.float32)

    mask = smask_ref[...].astype(jnp.float32)   # hoisted out of time/depth loops
    w_dt = wht_ref.dtype

    def time_step(ts, s):
        htc = htc_ref[ts].astype(jnp.float32)    # (b_blk, 3*hid) single fused load
        H_t = htc[:, :hid]
        T_t = htc[:, hid:2 * hid]
        C_t = htc[:, 2 * hid:]
        for l in range(depth):                    # depth is small & static -> unrolled
            sm = (mask * s).astype(w_dt)          # single masked state (tied noise)
            lin = jnp.dot(sm, wht_ref[l],
                          preferred_element_type=jnp.float32) + bht_ref[l]
            h_lin = lin[:, :hid]
            t_lin = lin[:, hid:]                  # == c_lin (tied noise, Wt reused for C)
            if l == 0:
                Hl = jnp.tanh(H_t + h_lin)
                Tl = jax.nn.sigmoid(T_t + t_lin)
                Cl = jax.nn.sigmoid(C_t + t_lin)
                s = Hl * Tl + s * Cl
            else:
                Hl = jnp.tanh(h_lin)
                Tl = jax.nn.sigmoid(t_lin)
                s = (Hl + s) * Tl                 # Cl == Tl for l > 0 (tied noise)
        out_ref[ts] = s.astype(out_ref.dtype)
        return s

    state_ref[...] = lax.fori_loop(0, t_blk, time_step, state_ref[...], unroll=unroll)


def _rhn_kernel_untied(htc_ref,    # (t_blk, b_blk, 3*hid)
                       h0_ref,     # (b_blk, hid)
                       smask_ref,  # (3, b_blk, hid) hidden masks (H, T, C)
                       wh_ref, wt_ref,   # (depth, hid, hid)
                       bh_ref, bt_ref,   # (depth, 1, hid) f32
                       out_ref,    # (t_blk, b_blk, hid)
                       state_ref,  # scratch (b_blk, hid) f32
                       *, depth, hid, b_blk, t_blk, unroll):
    @pl.when(pl.program_id(1) == 0)
    def _():
        state_ref[...] = h0_ref[...].astype(jnp.float32)

    m_h = smask_ref[0].astype(jnp.float32)
    m_t = smask_ref[1].astype(jnp.float32)
    m_c = smask_ref[2].astype(jnp.float32)
    w_dt = wh_ref.dtype

    def time_step(ts, s):
        htc = htc_ref[ts].astype(jnp.float32)
        H_t = htc[:, :hid]
        T_t = htc[:, hid:2 * hid]
        C_t = htc[:, 2 * hid:]
        for l in range(depth):
            h_lin = jnp.dot((m_h * s).astype(w_dt), wh_ref[l],
                            preferred_element_type=jnp.float32) + bh_ref[l]
            # T and C share the same RHS (the module uses rnn_T weights for the C gate):
            # fuse into one row-stacked (2*b_blk, hid) @ (hid, hid) MXU push.
            tc_in = jnp.concatenate([m_t * s, m_c * s], axis=0).astype(w_dt)
            tc_lin = jnp.dot(tc_in, wt_ref[l],
                             preferred_element_type=jnp.float32) + bt_ref[l]
            t_lin = tc_lin[:b_blk]
            c_lin = tc_lin[b_blk:]
            if l == 0:
                Hl = jnp.tanh(H_t + h_lin)
                Tl = jax.nn.sigmoid(T_t + t_lin)
                Cl = jax.nn.sigmoid(C_t + c_lin)
            else:
                Hl = jnp.tanh(h_lin)
                Tl = jax.nn.sigmoid(t_lin)
                Cl = jax.nn.sigmoid(c_lin)
            s = Hl * Tl + s * Cl
        out_ref[ts] = s.astype(out_ref.dtype)
        return s

    state_ref[...] = lax.fori_loop(0, t_blk, time_step, state_ref[...], unroll=unroll)


def _spec(shape, index_map, *, single_buffer=False):
    """BlockSpec helper; single_buffer=True drops the second pipeline buffer for
    grid-invariant (or slowly-varying) operands."""
    if single_buffer:
        try:
            return pl.BlockSpec(shape, index_map, pipeline_mode=pl.Buffered(1))
        except TypeError:   # older jax without pipeline_mode kwarg: fall back (just uses more VMEM)
            return pl.BlockSpec(shape, index_map)
    return pl.BlockSpec(shape, index_map)


def _physical_vmem_bytes():
    try:
        return int(pltpu.get_tpu_info().vmem_capacity_bytes)
    except Exception:
        return 64 << 20   # conservative: v7x per-TensorCore VMEM


# ----------------------------------------------------------------------------
# Wrapper
# ----------------------------------------------------------------------------
@functools.partial(jax.jit, static_argnames=("tied_noise", "t_blk", "b_blk",
                                             "matmul_dtype", "stream_dtype",
                                             "time_unroll"))
def rhn_forward(inp, hidden, imasks, smasks,
                wih, wit, wic, bih, bit, bic, wh, wt, bh, bt,
                *, tied_noise=True, t_blk=16, b_blk=None,
                matmul_dtype=jnp.float32, stream_dtype=jnp.float32,
                time_unroll=None):
    S, B, in_dim = inp.shape
    hid = hidden.shape[1]
    depth = wh.shape[0]
    out_dtype = inp.dtype

    # ---- tiling choices ----
    t_blk = max(1, min(int(t_blk), S))
    pad = (-S) % t_blk
    S_pad = S + pad
    n_t = S_pad // t_blk

    if b_blk is None:
        b_blk = B
    b_blk = int(b_blk)
    if b_blk >= B or B % b_blk != 0 or b_blk % 8 != 0:
        b_blk = B                                   # keep (8,128) tiling constraint satisfied
    n_b = B // b_blk

    # ---- pad the sequence ONCE on the small input (before the 3*hid expansion) ----
    if pad:
        inp = jnp.pad(inp, ((0, pad), (0, 0), (0, 0)))
    inp_f = inp.astype(jnp.float32)

    # ---- Hoisted input projections: one big MXU-efficient GEMM (tied) / three (untied),
    #      run in matmul_dtype with f32 accumulation, emitted as ONE fused HTC stream ----
    def proj(x_flat, w, b):
        return jnp.dot(x_flat.astype(matmul_dtype), w.astype(matmul_dtype),
                       preferred_element_type=jnp.float32) + b

    if tied_noise:
        w_in = jnp.concatenate([wih, wit, wic], axis=1)          # (in_dim, 3*hid)
        b_in = jnp.concatenate([bih, bit, bic], axis=1)          # (1, 3*hid)
        xm = (inp_f * imasks[0][None]).reshape(S_pad * B, in_dim)
        HTC = proj(xm, w_in, b_in)                               # (S_pad*B, 3*hid)
    else:
        xs = [(inp_f * imasks[i][None]).reshape(S_pad * B, in_dim) for i in range(3)]
        HTC = jnp.concatenate([proj(xs[0], wih, bih),
                               proj(xs[1], wit, bit),
                               proj(xs[2], wic, bic)], axis=1)
    HTC = HTC.reshape(S_pad, B, 3 * hid).astype(stream_dtype)    # single lane-dense stream

    # ---- Recurrent parameters (optionally bf16 for the MXU; biases/masks/state stay f32) ----
    if tied_noise:
        wht = jnp.concatenate([wh, wt], axis=2).astype(matmul_dtype)   # (depth, hid, 2*hid)
        bht = jnp.concatenate([bh, bt], axis=2).astype(jnp.float32)    # (depth, 1, 2*hid)
        smask_arg = smasks[0].astype(jnp.float32)                      # (B, hid)
        param_args = (wht, bht)
        param_specs = [_spec((depth, hid, 2 * hid), lambda b, t: (0, 0, 0), single_buffer=True),
                       _spec((depth, 1, 2 * hid), lambda b, t: (0, 0, 0), single_buffer=True)]
        smask_spec = _spec((b_blk, hid), lambda b, t: (b, 0), single_buffer=True)
    else:
        smask_arg = smasks.astype(jnp.float32)                         # (3, B, hid)
        param_args = (wh.astype(matmul_dtype), wt.astype(matmul_dtype),
                      bh.astype(jnp.float32), bt.astype(jnp.float32))
        param_specs = [_spec((depth, hid, hid), lambda b, t: (0, 0, 0), single_buffer=True),
                       _spec((depth, hid, hid), lambda b, t: (0, 0, 0), single_buffer=True),
                       _spec((depth, 1, hid), lambda b, t: (0, 0, 0), single_buffer=True),
                       _spec((depth, 1, hid), lambda b, t: (0, 0, 0), single_buffer=True)]
        smask_spec = _spec((3, b_blk, hid), lambda b, t: (0, b, 0), single_buffer=True)

    htc_spec = pl.BlockSpec((t_blk, b_blk, 3 * hid), lambda b, t: (t, b, 0))
    out_spec = pl.BlockSpec((t_blk, b_blk, hid), lambda b, t: (t, b, 0))
    h0_spec = _spec((b_blk, hid), lambda b, t: (b, 0), single_buffer=True)

    # ---- time-loop unroll: full only for small tiles; limit when vreg pressure is high ----
    if time_unroll is None:
        temp_vregs = max(1, (b_blk * hid + 1023) // 1024)   # vregs per (b_blk, hid) f32 temp
        unroll = True if temp_vregs <= 2 else (4 if temp_vregs <= 8 else 2)
    else:
        unroll = time_unroll

    if tied_noise:
        kernel = functools.partial(_rhn_kernel_tied, depth=depth, hid=hid,
                                   t_blk=t_blk, unroll=unroll)
    else:
        kernel = functools.partial(_rhn_kernel_untied, depth=depth, hid=hid,
                                   b_blk=b_blk, t_blk=t_blk, unroll=unroll)

    # ---- VMEM budget from the actual block footprint, capped per TPU generation ----
    f32b = 4
    stream_b = jnp.dtype(stream_dtype).itemsize
    out_b = jnp.dtype(out_dtype).itemsize
    w_b = jnp.dtype(matmul_dtype).itemsize
    needed = 2 * t_blk * b_blk * 3 * hid * stream_b           # HTC stream, double-buffered
    needed += 2 * t_blk * b_blk * hid * out_b                 # output, double-buffered
    needed += 2 * b_blk * hid * f32b                          # h0 (single buf) + state scratch
    if tied_noise:
        needed += depth * hid * 2 * hid * w_b + depth * 2 * hid * f32b
        needed += b_blk * hid * f32b                          # smask
    else:
        needed += 2 * depth * hid * hid * w_b + 2 * depth * hid * f32b
        needed += 3 * b_blk * hid * f32b
    phys = _physical_vmem_bytes()
    headroom = (12 << 20) if phys <= (80 << 20) else (20 << 20)   # v7x: ~52 MiB cap; v5e/v6e: ~108 MiB
    cap = max(16 << 20, phys - headroom)
    vmem_limit = int(min(max(needed + (8 << 20), 16 << 20), cap))

    outs = pl.pallas_call(
        kernel,
        out_shape=jax.ShapeDtypeStruct((S_pad, B, hid), out_dtype),
        grid_spec=pltpu.PrefetchScalarGridSpec(
            num_scalar_prefetch=0,
            grid=(n_b, n_t),                         # batch blocks (parallel), time (sequential)
            in_specs=[htc_spec, h0_spec, smask_spec, *param_specs],
            out_specs=out_spec,
            scratch_shapes=[pltpu.VMEM((b_blk, hid), jnp.float32)],
        ),
        compiler_params=pltpu.CompilerParams(
            dimension_semantics=("parallel", "arbitrary"),
            vmem_limit_bytes=vmem_limit),
    )(HTC, hidden.astype(jnp.float32), smask_arg, *param_args)

    outs = outs[:S]
    return outs, outs[S - 1]


# ----------------------------------------------------------------------------
# Pure-JAX reference (mirrors the PyTorch forward exactly) for validation.
# ----------------------------------------------------------------------------
def rhn_reference(inp, hidden, imasks, smasks,
                  wih, wit, wic, bih, bit, bic, wh, wt, bh, bt):
    seq_len = inp.shape[0]
    depth = wh.shape[0]
    H = jnp.einsum('sbi,ih->sbh', inp * imasks[0][None], wih) + bih
    T = jnp.einsum('sbi,ih->sbh', inp * imasks[1][None], wit) + bit
    C = jnp.einsum('sbi,ih->sbh', inp * imasks[2][None], wic) + bic
    outs = []
    s = hidden
    for ts in range(seq_len):
        H_t, T_t, C_t = H[ts], T[ts], C[ts]
        for l in range(depth):
            h_lin = (smasks[0] * s) @ wh[l] + bh[l]
            t_lin = (smasks[1] * s) @ wt[l] + bt[l]
            c_lin = (smasks[2] * s) @ wt[l] + bt[l]   # rnn_T used for C (as in PyTorch)
            if l == 0:
                Hl = jnp.tanh(H_t + h_lin)
                Tl = jax.nn.sigmoid(T_t + t_lin)
                Cl = jax.nn.sigmoid(C_t + c_lin)
            else:
                Hl = jnp.tanh(h_lin)
                Tl = jax.nn.sigmoid(t_lin)
                Cl = jax.nn.sigmoid(c_lin)
            s = Hl * Tl + s * Cl
        outs.append(s)
    return jnp.stack(outs), outs[-1]


# ----------------------------------------------------------------------------
# Deterministic parameter / mask construction (shapes from _RHN.__init__)
# ----------------------------------------------------------------------------
def _linear_init(key, fan_in, fan_out, bias=True):
    kw, kb = jax.random.split(key)
    bound = 1.0 / jnp.sqrt(fan_in)
    w = jax.random.uniform(kw, (fan_in, fan_out), jnp.float32, -bound, bound)
    b = (jax.random.uniform(kb, (1, fan_out), jnp.float32, -bound, bound)
         if bias else jnp.zeros((1, fan_out), jnp.float32))
    return w, b


def _dropout_mask(key, p, size):
    keep_p = 1.0 - p
    return jax.random.bernoulli(key, keep_p, size).astype(jnp.float32) / keep_p


if __name__ == "__main__":
    seq_len, batch, in_dim, hid_dim, depth = 8, 16, 16, 32, 2
    input_dropout, hidden_dropout = 0.75, 0.25

    key = jax.random.PRNGKey(0)
    keys = jax.random.split(key, 20)

    inp = jax.random.normal(keys[0], (seq_len, batch, in_dim), jnp.float32)
    hidden = jax.random.normal(keys[1], (batch, hid_dim), jnp.float32)

    # Input projections (with bias); T/C biases set to -3 like _custom_rhn_init.
    wih, bih = _linear_init(keys[2], in_dim, hid_dim)
    wit, _ = _linear_init(keys[3], in_dim, hid_dim)
    wic, _ = _linear_init(keys[4], in_dim, hid_dim)
    bit = jnp.full((1, hid_dim), -3.0, jnp.float32)
    bic = jnp.full((1, hid_dim), -3.0, jnp.float32)

    # Recurrent H / T (rnn_C weights exist in the module but are unused in forward).
    wh_list, wt_list, bh_list, bt_list = [], [], [], []
    for layer in range(depth):
        has_bias = layer != 0
        w, b = _linear_init(keys[5 + 2 * layer], hid_dim, hid_dim, bias=has_bias)
        wh_list.append(w)
        bh_list.append(b)
        w, b = _linear_init(keys[6 + 2 * layer], hid_dim, hid_dim, bias=has_bias)
        wt_list.append(w)
        bt_list.append(jnp.full((1, hid_dim), -3.0, jnp.float32) if has_bias else b)
    wh = jnp.stack(wh_list)
    wt = jnp.stack(wt_list)
    bh = jnp.stack(bh_list)
    bt = jnp.stack(bt_list)

    # Dropout masks.
    im = _dropout_mask(keys[12], input_dropout, (batch, in_dim))
    sm = _dropout_mask(keys[13], hidden_dropout, (batch, hid_dim))

    # -------- tied-noise path (module default): fused recurrent matmuls,
    #          2-D grid (batch blocked, b_blk=8 -> 2 batch blocks x 2 time blocks) --------
    imasks_t = jnp.stack([im, im, im])
    smasks_t = jnp.stack([sm, sm, sm])
    args_t = (inp, hidden, imasks_t, smasks_t,
              wih, wit, wic, bih, bit, bic, wh, wt, bh, bt)

    outs, last = rhn_forward(*args_t, tied_noise=True, t_blk=4, b_blk=8)
    jax.block_until_ready((outs, last))
    ref_outs, ref_last = rhn_reference(*args_t)
    assert outs.shape == (seq_len, batch, hid_dim)
    assert last.shape == (batch, hid_dim)
    assert jnp.allclose(outs, ref_outs, atol=1e-4, rtol=1e-4)
    assert jnp.allclose(last, ref_last, atol=1e-4, rtol=1e-4)

    # -------- untied-noise path: separate masks, fused T/C recurrent dot --------
    imasks_u = jnp.stack([im,
                          _dropout_mask(keys[14], input_dropout, (batch, in_dim)),
                          _dropout_mask(keys[15], input_dropout, (batch, in_dim))])
    smasks_u = jnp.stack([sm,
                          _dropout_mask(keys[16], hidden_dropout, (batch, hid_dim)),
                          _dropout_mask(keys[17], hidden_dropout, (batch, hid_dim))])
    args_u = (inp, hidden, imasks_u, smasks_u,
              wih, wit, wic, bih, bit, bic, wh, wt, bh, bt)

    outs_u, last_u = rhn_forward(*args_u, tied_noise=False, t_blk=8)
    jax.block_until_ready((outs_u, last_u))
    ref_outs_u, ref_last_u = rhn_reference(*args_u)
    assert jnp.allclose(outs_u, ref_outs_u, atol=1e-4, rtol=1e-4)
    assert jnp.allclose(last_u, ref_last_u, atol=1e-4, rtol=1e-4)

    # -------- bf16 weights + bf16 HTC stream (MXU/HBM path) + seq padding (t_blk=3) --------
    outs_bf, last_bf = rhn_forward(*args_t, tied_noise=True, t_blk=3,
                                   matmul_dtype=jnp.bfloat16,
                                   stream_dtype=jnp.bfloat16)
    jax.block_until_ready((outs_bf, last_bf))
    assert outs_bf.shape == (seq_len, batch, hid_dim)
    assert bool(jnp.all(jnp.isfinite(outs_bf)))
    assert jnp.allclose(outs_bf, ref_outs, atol=0.3, rtol=0.3)   # loose: bf16 throughout

    print("KERNEL_OK")
</pallas_src>

<mosaic_0001>
module attributes {stable_mosaic.version = 11 : i64} {
  func.func @_rhn_kernel_tied(%arg0: i32, %arg1: i32, %arg2: memref<4x8x96xf32, #tpu.memory_space<vmem>>, %arg3: memref<8x32xf32, #tpu.memory_space<vmem>>, %arg4: memref<8x32xf32, #tpu.memory_space<vmem>>, %arg5: memref<2x32x64xf32, #tpu.memory_space<vmem>>, %arg6: memref<2x1x64xf32, #tpu.memory_space<vmem>>, %arg7: memref<4x8x32xf32, #tpu.memory_space<vmem>>, %arg8: memref<8x32xf32, #tpu.memory_space<vmem>>) attributes {dimension_semantics = [#tpu.dimension_semantics<parallel>, #tpu.dimension_semantics<arbitrary>], iteration_bounds = array<i64: 2, 2>, scalar_prefetch = 0 : i64, scratch_operands = 1 : i64, tpu.core_type = #tpu.core_type<tc>, window_params = [{transform_indices = @transform_0, window_bounds = array<i64: 4, 8, 96>}, {pipeline_mode = #tpu.pipeline_mode<synchronous>, transform_indices = @transform_1, window_bounds = array<i64: 8, 32>}, {pipeline_mode = #tpu.pipeline_mode<synchronous>, transform_indices = @transform_2, window_bounds = array<i64: 8, 32>}, {pipeline_mode = #tpu.pipeline_mode<synchronous>, transform_indices = @transform_3, window_bounds = array<i64: 2, 32, 64>}, {pipeline_mode = #tpu.pipeline_mode<synchronous>, transform_indices = @transform_4, window_bounds = array<i64: 2, 1, 64>}, {transform_indices = @transform_5, window_bounds = array<i64: 4, 8, 32>}]} {
    %c0_i32 = arith.constant 0 : i32
    %0 = arith.cmpi eq, %arg1, %c0_i32 : i32
    %1 = arith.extui %0 : i1 to i32
    %c0_i32_0 = arith.constant 0 : i32
    %2 = arith.cmpi ne, %1, %c0_i32_0 : i32
    scf.if %2 {
      %c0_89 = arith.constant 0 : index
      %c0_90 = arith.constant 0 : index
      %226 = vector.load %arg3[%c0_89, %c0_90] : memref<8x32xf32, #tpu.memory_space<vmem>>, vector<8x32xf32>
      %c0_91 = arith.constant 0 : index
      %c0_92 = arith.constant 0 : index
      %227 = vector.load %arg8[%c0_91, %c0_92] : memref<8x32xf32, #tpu.memory_space<vmem>>, vector<8x32xf32>
      tpu.vector_store %arg8[%c0_91, %c0_92], %226 {strides = array<i32>} : memref<8x32xf32, #tpu.memory_space<vmem>>, vector<8x32xf32>,
    } else {
    }
    %c0 = arith.constant 0 : index
    %c0_1 = arith.constant 0 : index
    %3 = vector.load %arg4[%c0, %c0_1] : memref<8x32xf32, #tpu.memory_space<vmem>>, vector<8x32xf32>
    %c0_2 = arith.constant 0 : index
    %c0_3 = arith.constant 0 : index
    %4 = vector.load %arg8[%c0_2, %c0_3] : memref<8x32xf32, #tpu.memory_space<vmem>>, vector<8x32xf32>
    %c0_i32_4 = arith.constant 0 : i32
    %5 = arith.index_cast %c0_i32_4 : i32 to index
    %c0_5 = arith.constant 0 : index
    %c0_6 = arith.constant 0 : index
    %6 = vector.load %arg2[%5, %c0_5, %c0_6] : memref<4x8x96xf32, #tpu.memory_space<vmem>>, vector<1x8x96xf32>
    %7 = vector.shape_cast %6 : vector<1x8x96xf32> to vector<8x96xf32>
    %8 = vector.extract_strided_slice %7 {offsets = [0, 0], sizes = [8, 32], strides = [1, 1]} : vector<8x96xf32> to vector<8x32xf32>
    %9 = vector.extract_strided_slice %7 {offsets = [0, 32], sizes = [8, 32], strides = [1, 1]} : vector<8x96xf32> to vector<8x32xf32>
    %10 = vector.extract_strided_slice %7 {offsets = [0, 64], sizes = [8, 32], strides = [1, 1]} : vector<8x96xf32> to vector<8x32xf32>
    %11 = arith.mulf %3, %4 : vector<8x32xf32>
    %c0_7 = arith.constant 0 : index
    %c0_8 = arith.constant 0 : index
    %c0_9 = arith.constant 0 : index
    %12 = vector.load %arg5[%c0_7, %c0_8, %c0_9] : memref<2x32x64xf32, #tpu.memory_space<vmem>>, vector<1x32x64xf32>
    %13 = vector.shape_cast %12 : vector<1x32x64xf32> to vector<32x64xf32>
    %cst = arith.constant dense<0.000000e+00> : vector<8x64xf32>
    %14 = tpu.matmul %11, %13, %cst {dimension_numbers = #tpu.dot_dimension_numbers<[1], [0], [0], [1], [0, 0, 1, 1], [], []>} : vector<8x32xf32>, vector<32x64xf32>, vector<8x64xf32> -> vector<8x64xf32>
    %c0_10 = arith.constant 0 : index
    %c0_11 = arith.constant 0 : index
    %c0_12 = arith.constant 0 : index
    %15 = vector.load %arg6[%c0_10, %c0_11, %c0_12] : memref<2x1x64xf32, #tpu.memory_space<vmem>>, vector<1x1x64xf32>
    %16 = vector.shape_cast %15 : vector<1x1x64xf32> to vector<1x64xf32>
    %17 = vector.broadcast %16 : vector<1x64xf32> to vector<8x64xf32>
    %18 = arith.addf %14, %17 : vector<8x64xf32>
    %19 = vector.extract_strided_slice %18 {offsets = [0, 0], sizes = [8, 32], strides = [1, 1]} : vector<8x64xf32> to vector<8x32xf32>
    %20 = vector.extract_strided_slice %18 {offsets = [0, 32], sizes = [8, 32], strides = [1, 1]} : vector<8x64xf32> to vector<8x32xf32>
    %21 = arith.addf %8, %19 : vector<8x32xf32>
    %22 = math.tanh %21 : vector<8x32xf32>
    %23 = arith.addf %9, %20 : vector<8x32xf32>
    %24 = arith.negf %23 : vector<8x32xf32>
    %25 = math.exp %24 : vector<8x32xf32>
    %cst_13 = arith.constant 1.000000e+00 : f32
    %26 = vector.broadcast %cst_13 : f32 to vector<8x32xf32>
    %27 = arith.addf %26, %25 : vector<8x32xf32>
    %28 = arith.divf %26, %27 : vector<8x32xf32>
    %29 = arith.addf %10, %20 : vector<8x32xf32>
    %30 = arith.negf %29 : vector<8x32xf32>
    %31 = math.exp %30 : vector<8x32xf32>
    %cst_14 = arith.constant 1.000000e+00 : f32
    %32 = vector.broadcast %cst_14 : f32 to vector<8x32xf32>
    %33 = arith.addf %32, %31 : vector<8x32xf32>
    %34 = arith.divf %32, %33 : vector<8x32xf32>
    %35 = arith.mulf %22, %28 : vector<8x32xf32>
    %36 = arith.mulf %4, %34 : vector<8x32xf32>
    %37 = arith.addf %35, %36 : vector<8x32xf32>
    %38 = arith.mulf %3, %37 : vector<8x32xf32>
    %c1 = arith.constant 1 : index
    %c0_15 = arith.constant 0 : index
    %c0_16 = arith.constant 0 : index
    %39 = vector.load %arg5[%c1, %c0_15, %c0_16] : memref<2x32x64xf32, #tpu.memory_space<vmem>>, vector<1x32x64xf32>
    %40 = vector.shape_cast %39 : vector<1x32x64xf32> to vector<32x64xf32>
    %cst_17 = arith.constant dense<0.000000e+00> : vector<8x64xf32>
    %41 = tpu.matmul %38, %40, %cst_17 {dimension_numbers = #tpu.dot_dimension_numbers<[1], [0], [0], [1], [0, 0, 1, 1], [], []>} : vector<8x32xf32>, vector<32x64xf32>, vector<8x64xf32> -> vector<8x64xf32>
    %c1_18 = arith.constant 1 : index
    %c0_19 = arith.constant 0 : index
    %c0_20 = arith.constant 0 : index
    %42 = vector.load %arg6[%c1_18, %c0_19, %c0_20] : memref<2x1x64xf32, #tpu.memory_space<vmem>>, vector<1x1x64xf32>
    %43 = vector.shape_cast %42 : vector<1x1x64xf32> to vector<1x64xf32>
    %44 = vector.broadcast %43 : vector<1x64xf32> to vector<8x64xf32>
    %45 = arith.addf %41, %44 : vector<8x64xf32>
    %46 = vector.extract_strided_slice %45 {offsets = [0, 0], sizes = [8, 32], strides = [1, 1]} : vector<8x64xf32> to vector<8x32xf32>
    %47 = vector.extract_strided_slice %45 {offsets = [0, 32], sizes = [8, 32], strides = [1, 1]} : vector<8x64xf32> to vector<8x32xf32>
    %48 = math.tanh %46 : vector<8x32xf32>
    %49 = arith.negf %47 : vector<8x32xf32>
    %50 = math.exp %49 : vector<8x32xf32>
    %cst_21 = arith.constant 1.000000e+00 : f32
    %51 = vector.broadcast %cst_21 : f32 to vector<8x32xf32>
    %52 = arith.addf %51, %50 : vector<8x32xf32>
    %53 = arith.divf %51, %52 : vector<8x32xf32>
    %54 = arith.addf %48, %37 : vector<8x32xf32>
    %55 = arith.mulf %54, %53 : vector<8x32xf32>
    %56 = arith.index_cast %c0_i32_4 : i32 to index
    %c0_22 = arith.constant 0 : index
    %c0_23 = arith.constant 0 : index
    %57 = vector.load %arg7[%56, %c0_22, %c0_23] : memref<4x8x32xf32, #tpu.memory_space<vmem>>, vector<1x8x32xf32>
    %58 = vector.shape_cast %57 : vector<1x8x32xf32> to vector<8x32xf32>
    %59 = vector.shape_cast %55 : vector<8x32xf32> to vector<1x8x32xf32>
    tpu.vector_store %arg7[%56, %c0_22, %c0_23], %59 {strides = array<i32>} : memref<4x8x32xf32, #tpu.memory_space<vmem>>, vector<1x8x32xf32>,
    %c1_i32 = arith.constant 1 : i32
    %60 = arith.index_cast %c1_i32 : i32 to index
    %c0_24 = arith.constant 0 : index
    %c0_25 = arith.constant 0 : index
    %61 = vector.load %arg2[%60, %c0_24, %c0_25] : memref<4x8x96xf32, #tpu.memory_space<vmem>>, vector<1x8x96xf32>
    %62 = vector.shape_cast %61 : vector<1x8x96xf32> to vector<8x96xf32>
    %63 = vector.extract_strided_slice %62 {offsets = [0, 0], sizes = [8, 32], strides = [1, 1]} : vector<8x96xf32> to vector<8x32xf32>
    %64 = vector.extract_strided_slice %62 {offsets = [0, 32], sizes = [8, 32], strides = [1, 1]} : vector<8x96xf32> to vector<8x32xf32>
    %65 = vector.extract_strided_slice %62 {offsets = [0, 64], sizes = [8, 32], strides = [1, 1]} : vector<8x96xf32> to vector<8x32xf32>
    %66 = arith.mulf %3, %55 : vector<8x32xf32>
    %c0_26 = arith.constant 0 : index
    %c0_27 = arith.constant 0 : index
    %c0_28 = arith.constant 0 : index
    %67 = vector.load %arg5[%c0_26, %c0_27, %c0_28] : memref<2x32x64xf32, #tpu.memory_space<vmem>>, vector<1x32x64xf32>
    %68 = vector.shape_cast %67 : vector<1x32x64xf32> to vector<32x64xf32>
    %cst_29 = arith.constant dense<0.000000e+00> : vector<8x64xf32>
    %69 = tpu.matmul %66, %68, %cst_29 {dimension_numbers = #tpu.dot_dimension_numbers<[1], [0], [0], [1], [0, 0, 1, 1], [], []>} : vector<8x32xf32>, vector<32x64xf32>, vector<8x64xf32> -> vector<8x64xf32>
    %c0_30 = arith.constant 0 : index
    %c0_31 = arith.constant 0 : index
    %c0_32 = arith.constant 0 : index
    %70 = vector.load %arg6[%c0_30, %c0_31, %c0_32] : memref<2x1x64xf32, #tpu.memory_space<vmem>>, vector<1x1x64xf32>
    %71 = vector.shape_cast %70 : vector<1x1x64xf32> to vector<1x64xf32>
    %72 = vector.broadcast %71 : vector<1x64xf32> to vector<8x64xf32>
    %73 = arith.addf %69, %72 : vector<8x64xf32>
    %74 = vector.extract_strided_slice %73 {offsets = [0, 0], sizes = [8, 32], strides = [1, 1]} : vector<8x64xf32> to vector<8x32xf32>
    %75 = vector.extract_strided_slice %73 {offsets = [0, 32], sizes = [8, 32], strides = [1, 1]} : vector<8x64xf32> to vector<8x32xf32>
    %76 = arith.addf %63, %74 : vector<8x32xf32>
    %77 = math.tanh %76 : vector<8x32xf32>
    %78 = arith.addf %64, %75 : vector<8x32xf32>
    %79 = arith.negf %78 : vector<8x32xf32>
    %80 = math.exp %79 : vector<8x32xf32>
    %cst_33 = arith.constant 1.000000e+00 : f32
    %81 = vector.broadcast %cst_33 : f32 to vector<8x32xf32>
    %82 = arith.addf %81, %80 : vector<8x32xf32>
    %83 = arith.divf %81, %82 : vector<8x32xf32>
    %84 = arith.addf %65, %75 : vector<8x32xf32>
    %85 = arith.negf %84 : vector<8x32xf32>
    %86 = math.exp %85 : vector<8x32xf32>
    %cst_34 = arith.constant 1.000000e+00 : f32
    %87 = vector.broadcast %cst_34 : f32 to vector<8x32xf32>
    %88 = arith.addf %87, %86 : vector<8x32xf32>
    %89 = arith.divf %87, %88 : vector<8x32xf32>
    %90 = arith.mulf %77, %83 : vector<8x32xf32>
    %91 = arith.mulf %55, %89 : vector<8x32xf32>
    %92 = arith.addf %90, %91 : vector<8x32xf32>
    %93 = arith.mulf %3, %92 : vector<8x32xf32>
    %c1_35 = arith.constant 1 : index
    %c0_36 = arith.constant 0 : index
    %c0_37 = arith.constant 0 : index
    %94 = vector.load %arg5[%c1_35, %c0_36, %c0_37] : memref<2x32x64xf32, #tpu.memory_space<vmem>>, vector<1x32x64xf32>
    %95 = vector.shape_cast %94 : vector<1x32x64xf32> to vector<32x64xf32>
    %cst_38 = arith.constant dense<0.000000e+00> : vector<8x64xf32>
    %96 = tpu.matmul %93, %95, %cst_38 {dimension_numbers = #tpu.dot_dimension_numbers<[1], [0], [0], [1], [0, 0, 1, 1], [], []>} : vector<8x32xf32>, vector<32x64xf32>, vector<8x64xf32> -> vector<8x64xf32>
    %c1_39 = arith.constant 1 : index
    %c0_40 = arith.constant 0 : index
    %c0_41 = arith.constant 0 : index
    %97 = vector.load %arg6[%c1_39, %c0_40, %c0_41] : memref<2x1x64xf32, #tpu.memory_space<vmem>>, vector<1x1x64xf32>
    %98 = vector.shape_cast %97 : vector<1x1x64xf32> to vector<1x64xf32>
    %99 = vector.broadcast %98 : vector<1x64xf32> to vector<8x64xf32>
    %100 = arith.addf %96, %99 : vector<8x64xf32>
    %101 = vector.extract_strided_slice %100 {offsets = [0, 0], sizes = [8, 32], strides = [1, 1]} : vector<8x64xf32> to vector<8x32xf32>
    %102 = vector.extract_strided_slice %100 {offsets = [0, 32], sizes = [8, 32], strides = [1, 1]} : vector<8x64xf32> to vector<8x32xf32>
    %103 = math.tanh %101 : vector<8x32xf32>
    %104 = arith.negf %102 : vector<8x32xf32>
    %105 = math.exp %104 : vector<8x32xf32>
    %cst_42 = arith.constant 1.000000e+00 : f32
    %106 = vector.broadcast %cst_42 : f32 to vector<8x32xf32>
    %107 = arith.addf %106, %105 : vector<8x32xf32>
    %108 = arith.divf %106, %107 : vector<8x32xf32>
    %109 = arith.addf %103, %92 : vector<8x32xf32>
    %110 = arith.mulf %109, %108 : vector<8x32xf32>
    %111 = arith.index_cast %c1_i32 : i32 to index
    %c0_43 = arith.constant 0 : index
    %c0_44 = arith.constant 0 : index
    %112 = vector.load %arg7[%111, %c0_43, %c0_44] : memref<4x8x32xf32, #tpu.memory_space<vmem>>, vector<1x8x32xf32>
    %113 = vector.shape_cast %112 : vector<1x8x32xf32> to vector<8x32xf32>
    %114 = vector.shape_cast %110 : vector<8x32xf32> to vector<1x8x32xf32>
    tpu.vector_store %arg7[%111, %c0_43, %c0_44], %114 {strides = array<i32>} : memref<4x8x32xf32, #tpu.memory_space<vmem>>, vector<1x8x32xf32>,
    %c2_i32 = arith.constant 2 : i32
    %115 = arith.index_cast %c2_i32 : i32 to index
    %c0_45 = arith.constant 0 : index
    %c0_46 = arith.constant 0 : index
    %116 = vector.load %arg2[%115, %c0_45, %c0_46] : memref<4x8x96xf32, #tpu.memory_space<vmem>>, vector<1x8x96xf32>
    %117 = vector.shape_cast %116 : vector<1x8x96xf32> to vector<8x96xf32>
    %118 = vector.extract_strided_slice %117 {offsets = [0, 0], sizes = [8, 32], strides = [1, 1]} : vector<8x96xf32> to vector<8x32xf32>
    %119 = vector.extract_strided_slice %117 {offsets = [0, 32], sizes = [8, 32], strides = [1, 1]} : vector<8x96xf32> to vector<8x32xf32>
    %120 = vector.extract_strided_slice %117 {offsets = [0, 64], sizes = [8, 32], strides = [1, 1]} : vector<8x96xf32> to vector<8x32xf32>
    %121 = arith.mulf %3, %110 : vector<8x32xf32>
    %c0_47 = arith.constant 0 : index
    %c0_48 = arith.constant 0 : index
    %c0_49 = arith.constant 0 : index
    %122 = vector.load %arg5[%c0_47, %c0_48, %c0_49] : memref<2x32x64xf32, #tpu.memory_space<vmem>>, vector<1x32x64xf32>
    %123 = vector.shape_cast %122 : vector<1x32x64xf32> to vector<32x64xf32>
    %cst_50 = arith.constant dense<0.000000e+00> : vector<8x64xf32>
    %124 = tpu.matmul %121, %123, %cst_50 {dimension_numbers = #tpu.dot_dimension_numbers<[1], [0], [0], [1], [0, 0, 1, 1], [], []>} : vector<8x32xf32>, vector<32x64xf32>, vector<8x64xf32> -> vector<8x64xf32>
    %c0_51 = arith.constant 0 : index
    %c0_52 = arith.constant 0 : index
    %c0_53 = arith.constant 0 : index
    %125 = vector.load %arg6[%c0_51, %c0_52, %c0_53] : memref<2x1x64xf32, #tpu.memory_space<vmem>>, vector<1x1x64xf32>
    %126 = vector.shape_cast %125 : vector<1x1x64xf32> to vector<1x64xf32>
    %127 = vector.broadcast %126 : vector<1x64xf32> to vector<8x64xf32>
    %128 = arith.addf %124, %127 : vector<8x64xf32>
    %129 = vector.extract_strided_slice %128 {offsets = [0, 0], sizes = [8, 32], strides = [1, 1]} : vector<8x64xf32> to vector<8x32xf32>
    %130 = vector.extract_strided_slice %128 {offsets = [0, 32], sizes = [8, 32], strides = [1, 1]} : vector<8x64xf32> to vector<8x32xf32>
    %131 = arith.addf %118, %129 : vector<8x32xf32>
    %132 = math.tanh %131 : vector<8x32xf32>
    %133 = arith.addf %119, %130 : vector<8x32xf32>
    %134 = arith.negf %133 : vector<8x32xf32>
    %135 = math.exp %134 : vector<8x32xf32>
    %cst_54 = arith.constant 1.000000e+00 : f32
    %136 = vector.broadcast %cst_54 : f32 to vector<8x32xf32>
    %137 = arith.addf %136, %135 : vector<8x32xf32>
    %138 = arith.divf %136, %137 : vector<8x32xf32>
    %139 = arith.addf %120, %130 : vector<8x32xf32>
    %140 = arith.negf %139 : vector<8x32xf32>
    %141 = math.exp %140 : vector<8x32xf32>
    %cst_55 = arith.constant 1.000000e+00 : f32
    %142 = vector.broadcast %cst_55 : f32 to vector<8x32xf32>
    %143 = arith.addf %142, %141 : vector<8x32xf32>
    %144 = arith.divf %142, %143 : vector<8x32xf32>
    %145 = arith.mulf %132, %138 : vector<8x32xf32>
    %146 = arith.mulf %110, %144 : vector<8x32xf32>
    %147 = arith.addf %145, %146 : vector<8x32xf32>
    %148 = arith.mulf %3, %147 : vector<8x32xf32>
    %c1_56 = arith.constant 1 : index
    %c0_57 = arith.constant 0 : index
    %c0_58 = arith.constant 0 : index
    %149 = vector.load %arg5[%c1_56, %c0_57, %c0_58] : memref<2x32x64xf32, #tpu.memory_space<vmem>>, vector<1x32x64xf32>
    %150 = vector.shape_cast %149 : vector<1x32x64xf32> to vector<32x64xf32>
    %cst_59 = arith.constant dense<0.000000e+00> : vector<8x64xf32>
    %151 = tpu.matmul %148, %150, %cst_59 {dimension_numbers = #tpu.dot_dimension_numbers<[1], [0], [0], [1], [0, 0, 1, 1], [], []>} : vector<8x32xf32>, vector<32x64xf32>, vector<8x64xf32> -> vector<8x64xf32>
    %c1_60 = arith.constant 1 : index
    %c0_61 = arith.constant 0 : index
    %c0_62 = arith.constant 0 : index
    %152 = vector.load %arg6[%c1_60, %c0_61, %c0_62] : memref<2x1x64xf32, #tpu.memory_space<vmem>>, vector<1x1x64xf32>
    %153 = vector.shape_cast %152 : vector<1x1x64xf32> to vector<1x64xf32>
    %154 = vector.broadcast %153 : vector<1x64xf32> to vector<8x64xf32>
    %155 = arith.addf %151, %154 : vector<8x64xf32>
    %156 = vector.extract_strided_slice %155 {offsets = [0, 0], sizes = [8, 32], strides = [1, 1]} : vector<8x64xf32> to vector<8x32xf32>
    %157 = vector.extract_strided_slice %155 {offsets = [0, 32], sizes = [8, 32], strides = [1, 1]} : vector<8x64xf32> to vector<8x32xf32>
    %158 = math.tanh %156 : vector<8x32xf32>
    %159 = arith.negf %157 : vector<8x32xf32>
    %160 = math.exp %159 : vector<8x32xf32>
    %cst_63 = arith.constant 1.000000e+00 : f32
    %161 = vector.broadcast %cst_63 : f32 to vector<8x32xf32>
    %162 = arith.addf %161, %160 : vector<8x32xf32>
    %163 = arith.divf %161, %162 : vector<8x32xf32>
    %164 = arith.addf %158, %147 : vector<8x32xf32>
    %165 = arith.mulf %164, %163 : vector<8x32xf32>
    %166 = arith.index_cast %c2_i32 : i32 to index
    %c0_64 = arith.constant 0 : index
    %c0_65 = arith.constant 0 : index
    %167 = vector.load %arg7[%166, %c0_64, %c0_65] : memref<4x8x32xf32, #tpu.memory_space<vmem>>, vector<1x8x32xf32>
    %168 = vector.shape_cast %167 : vector<1x8x32xf32> to vector<8x32xf32>
    %169 = vector.shape_cast %165 : vector<8x32xf32> to vector<1x8x32xf32>
    tpu.vector_store %arg7[%166, %c0_64, %c0_65], %169 {strides = array<i32>} : memref<4x8x32xf32, #tpu.memory_space<vmem>>, vector<1x8x32xf32>,
    %c3_i32 = arith.constant 3 : i32
    %170 = arith.index_cast %c3_i32 : i32 to index
    %c0_66 = arith.constant 0 : index
    %c0_67 = arith.constant 0 : index
    %171 = vector.load %arg2[%170, %c0_66, %c0_67] : memref<4x8x96xf32, #tpu.memory_space<vmem>>, vector<1x8x96xf32>
    %172 = vector.shape_cast %171 : vector<1x8x96xf32> to vector<8x96xf32>
    %173 = vector.extract_strided_slice %172 {offsets = [0, 0], sizes = [8, 32], strides = [1, 1]} : vector<8x96xf32> to vector<8x32xf32>
    %174 = vector.extract_strided_slice %172 {offsets = [0, 32], sizes = [8, 32], strides = [1, 1]} : vector<8x96xf32> to vector<8x32xf32>
    %175 = vector.extract_strided_slice %172 {offsets = [0, 64], sizes = [8, 32], strides = [1, 1]} : vector<8x96xf32> to vector<8x32xf32>
    %176 = arith.mulf %3, %165 : vector<8x32xf32>
    %c0_68 = arith.constant 0 : index
    %c0_69 = arith.constant 0 : index
    %c0_70 = arith.constant 0 : index
    %177 = vector.load %arg5[%c0_68, %c0_69, %c0_70] : memref<2x32x64xf32, #tpu.memory_space<vmem>>, vector<1x32x64xf32>
    %178 = vector.shape_cast %177 : vector<1x32x64xf32> to vector<32x64xf32>
    %cst_71 = arith.constant dense<0.000000e+00> : vector<8x64xf32>
    %179 = tpu.matmul %176, %178, %cst_71 {dimension_numbers = #tpu.dot_dimension_numbers<[1], [0], [0], [1], [0, 0, 1, 1], [], []>} : vector<8x32xf32>, vector<32x64xf32>, vector<8x64xf32> -> vector<8x64xf32>
    %c0_72 = arith.constant 0 : index
    %c0_73 = arith.constant 0 : index
    %c0_74 = arith.constant 0 : index
    %180 = vector.load %arg6[%c0_72, %c0_73, %c0_74] : memref<2x1x64xf32, #tpu.memory_space<vmem>>, vector<1x1x64xf32>
    %181 = vector.shape_cast %180 : vector<1x1x64xf32> to vector<1x64xf32>
    %182 = vector.broadcast %181 : vector<1x64xf32> to vector<8x64xf32>
    %183 = arith.addf %179, %182 : vector<8x64xf32>
    %184 = vector.extract_strided_slice %183 {offsets = [0, 0], sizes = [8, 32], strides = [1, 1]} : vector<8x64xf32> to vector<8x32xf32>
    %185 = vector.extract_strided_slice %183 {offsets = [0, 32], sizes = [8, 32], strides = [1, 1]} : vector<8x64xf32> to vector<8x32xf32>
    %186 = arith.addf %173, %184 : vector<8x32xf32>
    %187 = math.tanh %186 : vector<8x32xf32>
    %188 = arith.addf %174, %185 : vector<8x32xf32>
    %189 = arith.negf %188 : vector<8x32xf32>
    %190 = math.exp %189 : vector<8x32xf32>
    %cst_75 = arith.constant 1.000000e+00 : f32
    %191 = vector.broadcast %cst_75 : f32 to vector<8x32xf32>
    %192 = arith.addf %191, %190 : vector<8x32xf32>
    %193 = arith.divf %191, %192 : vector<8x32xf32>
    %194 = arith.addf %175, %185 : vector<8x32xf32>
    %195 = arith.negf %194 : vector<8x32xf32>
    %196 = math.exp %195 : vector<8x32xf32>
    %cst_76 = arith.constant 1.000000e+00 : f32
    %197 = vector.broadcast %cst_76 : f32 to vector<8x32xf32>
    %198 = arith.addf %197, %196 : vector<8x32xf32>
    %199 = arith.divf %197, %198 : vector<8x32xf32>
    %200 = arith.mulf %187, %193 : vector<8x32xf32>
    %201 = arith.mulf %165, %199 : vector<8x32xf32>
    %202 = arith.addf %200, %201 : vector<8x32xf32>
    %203 = arith.mulf %3, %202 : vector<8x32xf32>
    %c1_77 = arith.constant 1 : index
    %c0_78 = arith.constant 0 : index
    %c0_79 = arith.constant 0 : index
    %204 = vector.load %arg5[%c1_77, %c0_78, %c0_79] : memref<2x32x64xf32, #tpu.memory_space<vmem>>, vector<1x32x64xf32>
    %205 = vector.shape_cast %204 : vector<1x32x64xf32> to vector<32x64xf32>
    %cst_80 = arith.constant dense<0.000000e+00> : vector<8x64xf32>
    %206 = tpu.matmul %203, %205, %cst_80 {dimension_numbers = #tpu.dot_dimension_numbers<[1], [0], [0], [1], [0, 0, 1, 1], [], []>} : vector<8x32xf32>, vector<32x64xf32>, vector<8x64xf32> -> vector<8x64xf32>
    %c1_81 = arith.constant 1 : index
    %c0_82 = arith.constant 0 : index
    %c0_83 = arith.constant 0 : index
    %207 = vector.load %arg6[%c1_81, %c0_82, %c0_83] : memref<2x1x64xf32, #tpu.memory_space<vmem>>, vector<1x1x64xf32>
    %208 = vector.shape_cast %207 : vector<1x1x64xf32> to vector<1x64xf32>
    %209 = vector.broadcast %208 : vector<1x64xf32> to vector<8x64xf32>
    %210 = arith.addf %206, %209 : vector<8x64xf32>
    %211 = vector.extract_strided_slice %210 {offsets = [0, 0], sizes = [8, 32], strides = [1, 1]} : vector<8x64xf32> to vector<8x32xf32>
    %212 = vector.extract_strided_slice %210 {offsets = [0, 32], sizes = [8, 32], strides = [1, 1]} : vector<8x64xf32> to vector<8x32xf32>
    %213 = math.tanh %211 : vector<8x32xf32>
    %214 = arith.negf %212 : vector<8x32xf32>
    %215 = math.exp %214 : vector<8x32xf32>
    %cst_84 = arith.constant 1.000000e+00 : f32
    %216 = vector.broadcast %cst_84 : f32 to vector<8x32xf32>
    %217 = arith.addf %216, %215 : vector<8x32xf32>
    %218 = arith.divf %216, %217 : vector<8x32xf32>
    %219 = arith.addf %213, %202 : vector<8x32xf32>
    %220 = arith.mulf %219, %218 : vector<8x32xf32>
    %221 = arith.index_cast %c3_i32 : i32 to index
    %c0_85 = arith.constant 0 : index
    %c0_86 = arith.constant 0 : index
    %222 = vector.load %arg7[%221, %c0_85, %c0_86] : memref<4x8x32xf32, #tpu.memory_space<vmem>>, vector<1x8x32xf32>
    %223 = vector.shape_cast %222 : vector<1x8x32xf32> to vector<8x32xf32>
    %224 = vector.shape_cast %220 : vector<8x32xf32> to vector<1x8x32xf32>
    tpu.vector_store %arg7[%221, %c0_85, %c0_86], %224 {strides = array<i32>} : memref<4x8x32xf32, #tpu.memory_space<vmem>>, vector<1x8x32xf32>,
    %c4_i32 = arith.constant 4 : i32
    %c0_87 = arith.constant 0 : index
    %c0_88 = arith.constant 0 : index
    %225 = vector.load %arg8[%c0_87, %c0_88] : memref<8x32xf32, #tpu.memory_space<vmem>>, vector<8x32xf32>
    tpu.vector_store %arg8[%c0_87, %c0_88], %220 {strides = array<i32>} : memref<8x32xf32, #tpu.memory_space<vmem>>, vector<8x32xf32>,
    return
  }
  func.func @transform_0(%arg0: i32, %arg1: i32) -> (i32, i32, i32) {
    %c0_i32 = arith.constant 0 : i32
    %c0_i32_0 = arith.constant 0 : i32
    return %arg1, %arg0, %c0_i32 : i32, i32, i32
  }
  func.func @transform_1(%arg0: i32, %arg1: i32) -> (i32, i32) {
    %c0_i32 = arith.constant 0 : i32
    %c0_i32_0 = arith.constant 0 : i32
    return %arg0, %c0_i32 : i32, i32
  }
  func.func @transform_2(%arg0: i32, %arg1: i32) -> (i32, i32) {
    %c0_i32 = arith.constant 0 : i32
    %c0_i32_0 = arith.constant 0 : i32
    return %arg0, %c0_i32 : i32, i32
  }
  func.func @transform_3(%arg0: i32, %arg1: i32) -> (i32, i32, i32) {
    %c0_i32 = arith.constant 0 : i32
    %c0_i32_0 = arith.constant 0 : i32
    %c0_i32_1 = arith.constant 0 : i32
    %c0_i32_2 = arith.constant 0 : i32
    return %c0_i32, %c0_i32_0, %c0_i32_1 : i32, i32, i32
  }
  func.func @transform_4(%arg0: i32, %arg1: i32) -> (i32, i32, i32) {
    %c0_i32 = arith.constant 0 : i32
    %c0_i32_0 = arith.constant 0 : i32
    %c0_i32_1 = arith.constant 0 : i32
    %c0_i32_2 = arith.constant 0 : i32
    return %c0_i32, %c0_i32_0, %c0_i32_1 : i32, i32, i32
  }
  func.func @transform_5(%arg0: i32, %arg1: i32) -> (i32, i32, i32) {
    %c0_i32 = arith.constant 0 : i32
    %c0_i32_0 = arith.constant 0 : i32
    return %arg1, %arg0, %c0_i32 : i32, i32, i32
  }
}

</mosaic_0001>

<llo_original>
// kernel: rhn_forward.1
$region0: #{rhn_forward.1}
  #allocation0 [shape = 'u32[]', space=smem, size = 0x4, offset = 0x4, fixed_abs, tag = 'smem constant byte address 0x4 - core index']
  #allocation1 [shape = 'u32[144,128]{1,0:T(1,128)}', space=vmem, size = 0x12000, scoped, tag = 'internal scratch']
  #allocation2 [shape = 'f32[8,32]{1,0:T(8,128)}', space=vmem, size = 0x1000, scoped, tag = 'scratch operand']
  %s0 = inlined_call_operand.vmem [shape: f32[8,16,96], index: 0, kind: input, shape index: {}]
  %s1 = inlined_call_operand.vmem [shape: f32[16,32], index: 1, kind: input, shape index: {}]
  %s2 = inlined_call_operand.vmem [shape: f32[16,32], index: 2, kind: input, shape index: {}]
  %s3 = inlined_call_operand.vmem [shape: f32[2,32,64], index: 3, kind: input, shape index: {}]
  %s4 = inlined_call_operand.vmem [shape: f32[2,1,64], index: 4, kind: input, shape index: {}]
  %s5 = inlined_call_operand.vmem [shape: f32[8,16,32], index: 5, kind: output, shape index: {}]
  %s6 = sld [smem:[#allocation0]]
  $region129: #{rhn_forward.1} parent=0
    _
  %s8 = ssub.s32 1, %s6
  %s9 = scalar_select 0, %s8, %s6
  $region1: #{rhn_forward.1} parent=0
    #allocation3 [shape = 'u8[32768]{0}', space=vmem, size = 0x8000, scoped, tag = 'input window, operand 0']
    #allocation4 [shape = 'u8[32768]{0}', space=vmem, size = 0x8000, scoped, tag = 'output window, operand 0']
    loop: start=0, step=1, limit=6
    $region2: #{rhn_forward.1} parent=1 // loop_pre_header
      _
    $region3: #{rhn_forward.1} parent=1 // loop_header
      %s11 = sphi 0, %s15
      %p12 = scmp.ge.s32.totalorder %s11, 6
      %s18 = sphi 0, %s30
      %s19 = sphi 0, %s26
      %s20 = sphi 0, %s18
      %s21 = sphi 0, %s19
      %s22 = sphi 0, %s20
      %s23 = sphi 0, %s21
      %s35 = sphi 0, %s37
      %s38 = sphi 0, %s35
      %s39 = sphi 0, %s38
      %s55 = sphi 0, %s39
      %s61 = sphi 0, %s63
      %s64 = sphi 0, %s61
      %s65 = sphi 0, %s64
      %s81 = sphi 0, %s65
      %s87 = sphi 0, %s89
      %s90 = sphi 0, %s87
      %s91 = sphi 0, %s90
      %s107 = sphi 0, %s91
      %s111 = sphi 0, %s111
      %s113 = sphi 0, %s111
      %s114 = sphi 0, %s113
      %s128 = sphi 0, %s114
      %s132 = sphi 0, %s132
      %s134 = sphi 0, %s132
      %s135 = sphi 0, %s134
      %s149 = sphi 0, %s135
      %s157 = sphi 0, %s159
      %s160 = sphi 0, %s157
      %s161 = sphi 0, %s160
      %s177 = sphi 0, %s161
    $region4: #{rhn_forward.1} parent=1 // loop_header_branch
      %14 = sbr.rel (%p12) target = $region8
    $region5: #{rhn_forward.1} parent=1 // loop_body
      %s16 = ssub.s32 %s11, 1
      %s17 = ssub.s32 %s11, 2
      %s24 = sadd.s32 1, %s19
      %p25 = scmp.ge.s32.totalorder %s24, 2
      %s26 = scalar_select %p25, 0, %s24
      %s27 = sadd.s32 1, %s18
      %s28 = scalar_select %p25, %s27, %s18
      %p29 = scmp.ge.s32.totalorder %s28, 2
      %s30 = scalar_select %p29, 0, %s28
      %s31 = ssub.s32 %s19, %s26
      %s32 = ssub.s32 %s18, %s30
      %s33 = sor.u32 %s31, %s32
      %p34 = scmp.eq.s32.totalorder %s33, 0
      %s36 = sadd.s32 %s35, 1
      %s37 = scalar_select %p34, %s35, %s36
      %p40 = pneg %p34
      %p41 = scmp.eq.s32.totalorder %s11, 3
      %p42 = por %p40, %p41
      %p43 = scmp.ne.s32.totalorder %s35, %s38
      %p44 = scmp.eq.s32.totalorder %s11, 0
      %p45 = por %p43, %p44
      %p46 = scmp.ne.s32.totalorder %s35, %s38
      %p47 = scmp.eq.s32.totalorder %s16, 3
      %p48 = por %p46, %p47
      %p49 = scmp.ne.s32.totalorder %s38, %s39
      %p50 = scmp.eq.s32.totalorder %s16, 0
      %p51 = por %p49, %p50
      %p52 = scmp.ne.s32.totalorder %s38, %s39
      %p53 = scmp.eq.s32.totalorder %s17, 3
      %p54 = por %p52, %p53
      %p56 = scmp.ne.s32.totalorder %s39, %s55
      %p57 = scmp.eq.s32.totalorder %s17, 0
      %p58 = por %p56, %p57
      %s59 = ssub.s32 %s18, %s30
      %p60 = scmp.eq.s32.totalorder %s59, 0
      %s62 = sadd.s32 %s61, 1
      %s63 = scalar_select %p60, %s61, %s62
      %p66 = pneg %p60
      %p67 = scmp.eq.s32.totalorder %s11, 3
      %p68 = por %p66, %p67
      %p69 = scmp.ne.s32.totalorder %s61, %s64
      %p70 = scmp.eq.s32.totalorder %s11, 0
      %p71 = por %p69, %p70
      %p72 = scmp.ne.s32.totalorder %s61, %s64
      %p73 = scmp.eq.s32.totalorder %s16, 3
      %p74 = por %p72, %p73
      %p75 = scmp.ne.s32.totalorder %s64, %s65
      %p76 = scmp.eq.s32.totalorder %s16, 0
      %p77 = por %p75, %p76
      %p78 = scmp.ne.s32.totalorder %s64, %s65
      %p79 = scmp.eq.s32.totalorder %s17, 3
      %p80 = por %p78, %p79
      %p82 = scmp.ne.s32.totalorder %s65, %s81
      %p83 = scmp.eq.s32.totalorder %s17, 0
      %p84 = por %p82, %p83
      %s85 = ssub.s32 %s18, %s30
      %p86 = scmp.eq.s32.totalorder %s85, 0
      %s88 = sadd.s32 %s87, 1
      %s89 = scalar_select %p86, %s87, %s88
      %p92 = pneg %p86
      %p93 = scmp.eq.s32.totalorder %s11, 3
      %p94 = por %p92, %p93
      %p95 = scmp.ne.s32.totalorder %s87, %s90
      %p96 = scmp.eq.s32.totalorder %s11, 0
      %p97 = por %p95, %p96
      %p98 = scmp.ne.s32.totalorder %s87, %s90
      %p99 = scmp.eq.s32.totalorder %s16, 3
      %p100 = por %p98, %p99
      %p101 = scmp.ne.s32.totalorder %s90, %s91
      %p102 = scmp.eq.s32.totalorder %s16, 0
      %p103 = por %p101, %p102
      %p104 = scmp.ne.s32.totalorder %s90, %s91
      %p105 = scmp.eq.s32.totalorder %s17, 3
      %p106 = por %p104, %p105
      %p108 = scmp.ne.s32.totalorder %s91, %s107
      %p109 = scmp.eq.s32.totalorder %s17, 0
      %p110 = por %p108, %p109
      %s112 = sadd.s32 %s111, 1
      %p115 = scmp.eq.s32.totalorder %s11, 3
      %p116 = scmp.ne.s32.totalorder %s111, %s113
      %p117 = scmp.eq.s32.totalorder %s11, 0
      %p118 = por %p116, %p117
      %p119 = scmp.ne.s32.totalorder %s111, %s113
      %p120 = scmp.eq.s32.totalorder %s16, 3
      %p121 = por %p119, %p120
      %p122 = scmp.ne.s32.totalorder %s113, %s114
      %p123 = scmp.eq.s32.totalorder %s16, 0
      %p124 = por %p122, %p123
      %p125 = scmp.ne.s32.totalorder %s113, %s114
      %p126 = scmp.eq.s32.totalorder %s17, 3
      %p127 = por %p125, %p126
      %p129 = scmp.ne.s32.totalorder %s114, %s128
      %p130 = scmp.eq.s32.totalorder %s17, 0
      %p131 = por %p129, %p130
      %s133 = sadd.s32 %s132, 1
      %p136 = scmp.eq.s32.totalorder %s11, 3
      %p137 = scmp.ne.s32.totalorder %s132, %s134
      %p138 = scmp.eq.s32.totalorder %s11, 0
      %p139 = por %p137, %p138
      %p140 = scmp.ne.s32.totalorder %s132, %s134
      %p141 = scmp.eq.s32.totalorder %s16, 3
      %p142 = por %p140, %p141
      %p143 = scmp.ne.s32.totalorder %s134, %s135
      %p144 = scmp.eq.s32.totalorder %s16, 0
      %p145 = por %p143, %p144
      %p146 = scmp.ne.s32.totalorder %s134, %s135
      %p147 = scmp.eq.s32.totalorder %s17, 3
      %p148 = por %p146, %p147
      %p150 = scmp.ne.s32.totalorder %s135, %s149
      %p151 = scmp.eq.s32.totalorder %s17, 0
      %p152 = por %p150, %p151
      %s153 = ssub.s32 %s19, %s26
      %s154 = ssub.s32 %s18, %s30
      %s155 = sor.u32 %s153, %s154
      %p156 = scmp.eq.s32.totalorder %s155, 0
      %s158 = sadd.s32 %s157, 1
      %s159 = scalar_select %p156, %s157, %s158
      %p162 = pneg %p156
      %p163 = scmp.eq.s32.totalorder %s11, 3
      %p164 = por %p162, %p163
      %p165 = scmp.ne.s32.totalorder %s157, %s160
      %p166 = scmp.eq.s32.totalorder %s11, 0
      %p167 = por %p165, %p166
      %p168 = scmp.ne.s32.totalorder %s157, %s160
      %p169 = scmp.eq.s32.totalorder %s16, 3
      %p170 = por %p168, %p169
      %p171 = scmp.ne.s32.totalorder %s160, %s161
      %p172 = scmp.eq.s32.totalorder %s16, 0
      %p173 = por %p171, %p172
      %p174 = scmp.ne.s32.totalorder %s160, %s161
      %p175 = scmp.eq.s32.totalorder %s17, 3
      %p176 = por %p174, %p175
      %p178 = scmp.ne.s32.totalorder %s161, %s177
      %p179 = scmp.eq.s32.totalorder %s17, 0
      %p180 = por %p178, %p179
      %p181 = scmp.le.s32.totalorder 1, %s11
      %p182 = scmp.lt.s32.totalorder %s11, 5
      %p183 = pnand %p181, %p182
      %p184 = pneg %p183
      // Predicated region
      $region9: #{rhn_forward.1} parent=5 // pred_check
        _
      $region10: #{rhn_forward.1} parent=5 // pred_check_branch
        %186 = sbr.rel (%p183) target = $region12
      $region11: #{rhn_forward.1} parent=5 // pred_region
        %s187 = ssub.s32 %s11, 1
        // Predicated region
        $region13: #{rhn_forward.1} parent=11 // pred_check
          %p188 = pneg %p77
        $region14: #{rhn_forward.1} parent=11 // pred_check_branch
          %190 = sbr.rel (%p188) target = $region16
        $region15: #{rhn_forward.1} parent=11 // pred_region
          %p191 = scmp.lt.s32.totalorder %s20, 1
          %s192 = scalar_select %p191, %s20, 1
          %s193 = smul.addr %s192, 8
          %s194 = scalar_lea.vmem %s1, %s193
        $region16: #{rhn_forward.1} parent=11 // pred_fallthru
          _
        // Predicated region
        $region17: #{rhn_forward.1} parent=11 // pred_check
          %p195 = pneg %p103
        $region18: #{rhn_forward.1} parent=11 // pred_check_branch
          %197 = sbr.rel (%p195) target = $region20
        $region19: #{rhn_forward.1} parent=11 // pred_region
          %p198 = scmp.lt.s32.totalorder %s20, 1
          %s199 = scalar_select %p198, %s20, 1
          %s200 = smul.addr %s199, 8
          %s201 = scalar_lea.vmem %s2, %s200
        $region20: #{rhn_forward.1} parent=11 // pred_fallthru
          _
        // Predicated region
        $region21: #{rhn_forward.1} parent=11 // pred_check
          %p202 = pneg %p124
        $region22: #{rhn_forward.1} parent=11 // pred_check_branch
          %204 = sbr.rel (%p202) target = $region24
        $region23: #{rhn_forward.1} parent=11 // pred_region
          _
        $region24: #{rhn_forward.1} parent=11 // pred_fallthru
          _
        // Predicated region
        $region25: #{rhn_forward.1} parent=11 // pred_check
          %p205 = pneg %p145
        $region26: #{rhn_forward.1} parent=11 // pred_check_branch
          %207 = sbr.rel (%p205) target = $region28
        $region27: #{rhn_forward.1} parent=11 // pred_region
          _
        $region28: #{rhn_forward.1} parent=11 // pred_fallthru
          _
      $region12: #{rhn_forward.1} parent=5 // pred_fallthru
        _
      %p208 = scmp.lt.s32.totalorder %s11, 4
      // Predicated region
      $region29: #{rhn_forward.1} parent=5 // pred_check
        %p209 = pneg %p208
      $region30: #{rhn_forward.1} parent=5 // pred_check_branch
        %211 = sbr.rel (%p209) target = $region32
      $region31: #{rhn_forward.1} parent=5 // pred_region
        // Predicated region
        $region33: #{rhn_forward.1} parent=31 // pred_check
          %p212 = pneg %p45
        $region34: #{rhn_forward.1} parent=31 // pred_check_branch
          %214 = sbr.rel (%p212) target = $region36
        $region35: #{rhn_forward.1} parent=31 // pred_region
          %s215 = sand.u32 %s35, 1
          %s216 = sand.u32 %s35, 1
          %s217 = smul.addr %s216, 32
          %s218 = scalar_lea.vmem [#allocation3], %s217
          %s219 = smul.u32 4, %s19
          %s220 = smul.addr %s219, 2
          %s221 = sadd.s32 %s18, %s220
          %s222 = smul.addr %s221, 8
          %s223 = scalar_lea.vmem %s0, %s222
          // Predicated region
          $region37: #{rhn_forward.1} parent=35 // pred_check
            _
          $region38: #{rhn_forward.1} parent=35 // pred_check_branch
            %225 = sbr.rel (0) target = $region40
          $region39: #{rhn_forward.1} parent=35 // pred_region
            // Predicated region
            $region41: #{rhn_forward.1} parent=39 // pred_check
              _
            $region42: #{rhn_forward.1} parent=39 // pred_check_branch
              %227 = sbr.rel (0) target = $region44
            $region43: #{rhn_forward.1} parent=39 // pred_region
              // Predicated region
              $region56: #{rhn_forward.1} parent=43 // pred_check
                _
              $region57: #{rhn_forward.1} parent=43 // pred_check_branch
                %248 = sbr.rel (0) target = $region59
              $region58: #{rhn_forward.1} parent=43 // pred_region
                loop: start=0, step=1, limit=1
                $region60: #{rhn_forward.1} parent=58 // loop_pre_header
                  _
                $region61: #{rhn_forward.1} parent=58 // loop_header
                  %s250 = sphi 0, %s254
                  %p251 = scmp.ge.s32.totalorder %s250, 1
                  %s255 = sphi %s223, %s223
                  %s256 = sphi %s218, %s218
                $region62: #{rhn_forward.1} parent=58 // loop_header_branch
                  %253 = sbr.rel (%p251) target = $region66
                $region63: #{rhn_forward.1} parent=58 // loop_body
                  %v257 = vld [vmem:[%s255] sm:$0xff]
                  %258 = vst [vmem:[%s256] sm:$0xff] %v257
                  %v259 = vld [vmem:[%s255 + $0x10] sm:$0xff]
                  %260 = vst [vmem:[%s256 + $0x8] sm:$0xff] %v259
                  %v261 = vld [vmem:[%s255 + $0x20] sm:$0xff]
                  %262 = vst [vmem:[%s256 + $0x10] sm:$0xff] %v261
                  %v263 = vld [vmem:[%s255 + $0x30] sm:$0xff]
                  %264 = vst [vmem:[%s256 + $0x18] sm:$0xff] %v263
                $region64: #{rhn_forward.1} parent=58 // loop_footer
                  %s254 = sadd.s32 1, %s250
                $region65: #{rhn_forward.1} parent=58 // loop_footer_branch
                  %249 = sbr.rel target = $region61
                $region66: #{rhn_forward.1} parent=58 // loop_exit
                  _
              $region59: #{rhn_forward.1} parent=43 // pred_fallthru
                _
              // Predicated region
              $region67: #{rhn_forward.1} parent=43 // pred_check
                _
              $region68: #{rhn_forward.1} parent=43 // pred_check_branch
                %266 = sbr.rel target = $region70
              $region69: #{rhn_forward.1} parent=43 // pred_region
                _
              $region70: #{rhn_forward.1} parent=43 // pred_fallthru
                _
            $region44: #{rhn_forward.1} parent=39 // pred_fallthru
              _
            // Predicated region
            $region45: #{rhn_forward.1} parent=39 // pred_check
              _
            $region46: #{rhn_forward.1} parent=39 // pred_check_branch
              %229 = sbr.rel target = $region48
            $region47: #{rhn_forward.1} parent=39 // pred_region
              loop: start=0, step=1, limit=1
              $region49: #{rhn_forward.1} parent=47 // loop_pre_header
                _
              $region50: #{rhn_forward.1} parent=47 // loop_header
                %s232 = sphi 0, %s236
                %p233 = scmp.ge.s32.totalorder %s232, 1
                %s237 = sphi %s223, %s223
                %s238 = sphi %s218, %s218
              $region51: #{rhn_forward.1} parent=47 // loop_header_branch
                %235 = sbr.rel (%p233) target = $region55
              $region52: #{rhn_forward.1} parent=47 // loop_body
                %v239 = vld [vmem:[%s237] sm:$0xff]
                %240 = vst [vmem:[%s238] sm:$0xff] %v239
                %v241 = vld [vmem:[%s237 + $0x10] sm:$0xff]
                %242 = vst [vmem:[%s238 + $0x8] sm:$0xff] %v241
                %v243 = vld [vmem:[%s237 + $0x20] sm:$0xff]
                %244 = vst [vmem:[%s238 + $0x10] sm:$0xff] %v243
                %v245 = vld [vmem:[%s237 + $0x30] sm:$0xff]
                %246 = vst [vmem:[%s238 + $0x18] sm:$0xff] %v245
              $region53: #{rhn_forward.1} parent=47 // loop_footer
                %s236 = sadd.s32 1, %s232
              $region54: #{rhn_forward.1} parent=47 // loop_footer_branch
                %231 = sbr.rel target = $region50
              $region55: #{rhn_forward.1} parent=47 // loop_exit
                _
            $region48: #{rhn_forward.1} parent=39 // pred_fallthru
              _
          $region40: #{rhn_forward.1} parent=35 // pred_fallthru
            _
          %267 = vnop
        $region36: #{rhn_forward.1} parent=31 // pred_fallthru
          _
      $region32: #{rhn_forward.1} parent=5 // pred_fallthru
        _
      %p268 = scmp.le.s32.totalorder 1, %s11
      %p269 = scmp.lt.s32.totalorder %s11, 5
      %p270 = pnand %p268, %p269
      %p271 = pneg %p270
      // Predicated region
      $region71: #{rhn_forward.1} parent=5 // pred_check
        _
      $region72: #{rhn_forward.1} parent=5 // pred_check_branch
        %273 = sbr.rel (%p270) target = $region74
      $region73: #{rhn_forward.1} parent=5 // pred_region
        %s274 = ssub.s32 %s11, 1
        %s275 = sand.u32 %s38, 1
        %s276 = sand.u32 %s38, 1
        %s277 = smul.addr %s276, 32
        %s278 = scalar_lea.vmem [#allocation3], %s277
        // Predicated region
        $region75: #{rhn_forward.1} parent=73 // pred_check
          %p279 = pneg %p51
        $region76: #{rhn_forward.1} parent=73 // pred_check_branch
          %281 = sbr.rel (%p279) target = $region78
        $region77: #{rhn_forward.1} parent=73 // pred_region
          _
        $region78: #{rhn_forward.1} parent=73 // pred_fallthru
          _
        %s282 = sand.u32 %s38, 1
        %s283 = sand.u32 %s38, 1
        %s284 = smul.addr %s283, 32
        %s285 = scalar_lea.vmem [#allocation3], %s284
        %p286 = pneg %p51
        %p287 = pneg %p48
        %p288 = scmp.lt.s32.totalorder %s20, 1
        %s289 = scalar_select %p288, %s20, 1
        %s290 = smul.addr %s289, 8
        %s291 = scalar_lea.vmem %s1, %s290
        %p292 = pneg %p77
        %p293 = pneg %p74
        %p294 = scmp.lt.s32.totalorder %s20, 1
        %s295 = scalar_select %p294, %s20, 1
        %s296 = smul.addr %s295, 8
        %s297 = scalar_lea.vmem %s2, %s296
        %p298 = pneg %p103
        %p299 = pneg %p100
        %p300 = pneg %p124
        %p301 = pneg %p121
        %p302 = pneg %p145
        %p303 = pneg %p142
        %p304 = pneg %p173
        %p305 = pneg %p170
        %s306 = sand.u32 %s160, 1
        %s307 = sand.u32 %s160, 1
        %s308 = smul.addr %s307, 32
        %s309 = scalar_lea.vmem [#allocation4], %s308
        %s310 = smul.u32 4, %s21
        %p311 = scmp.lt.s32.totalorder %s20, 1
        %s312 = scalar_select %p311, %s20, 1
        %s313 = smul.addr %s312, 8
        %s314 = scalar_lea.vmem %s1, %s313
        %p315 = scmp.lt.s32.totalorder %s20, 1
        %s316 = scalar_select %p315, %s20, 1
        %s317 = smul.addr %s316, 8
        %s318 = scalar_lea.vmem %s2, %s317
        %s319 = smul.u32 4, %s21
        %p320 = scmp.eq.s32.totalorder %s21, 0
        // Predicated region
        $region79: #{rhn_forward.1} parent=73 // pred_check
          %p321 = pneg %p320
        $region80: #{rhn_forward.1} parent=73 // pred_check_branch
          %323 = sbr.rel (%p321) target = $region82
        $region81: #{rhn_forward.1} parent=73 // pred_region
          %v324 = vld [vmem:[%s314] sm:$0xff]
          %vm325 = vcmask 261120
          %326 = vst.msk [vmem:[#allocation2] sm:$0xff] %vm325, %v324
        $region82: #{rhn_forward.1} parent=73 // pred_fallthru
          _
        %v327 = vld [vmem:[%s318] sm:$0xff]
        %v328 = vld [vmem:[#allocation2] sm:$0xff]
        %v329 = vld [vmem:[%s278] sm:$0xff]
        %v330 = vmul.f32 %v327, %v328
        %v331 = vld [vmem:[%s3] sm:$0xff]
        %v332 = vld [vmem:[%s3 + $0x8] sm:$0xff]
        %v333 = vld [vmem:[%s3 + $0x10] sm:$0xff]
        %v334 = vld [vmem:[%s3 + $0x18] sm:$0xff]
        %v335 = vld [vmem:[%s4] sm:$0x1]
        %v337 = vlaneseq
        %v338 = vshrl.u32 %v337, 7
        %v339 = vsub.s32 0, %v338
        %v340 = vrot.slane %v335, %v339
        %vm342 = vcmask 261120
        %v344 = vsel %vm342, %v330, 0
        %346 = vmatprep.subr.mxu0 0.0
        %347 = vmatpush1.msra.mxu0 %v331
        %348 = vmatprep.subr.mxu0 0.0
        %349 = vmatpush1.msra.mxu0 %v332
        %350 = vmatprep.subr.mxu0 0.0
        %351 = vmatpush1.msra.mxu0 %v333
        %352 = vmatprep.subr.mxu0 0.0
        %353 = vmatpush1.msra.mxu0 %v334
        %354 = vmatprep.subr.mxu0 0.0
        %355 = vmatpush1.msra.mxu0 0.0
        %356 = vmatprep.subr.mxu0 0.0
        %357 = vmatpush1.msra.mxu0 0.0
        %358 = vmatprep.subr.mxu0 0.0
        %359 = vmatpush1.msra.mxu0 0.0
        %360 = vmatprep.subr.mxu0 0.0
        %361 = vmatpush1.msra.mxu0 0.0
        %362 = vmatprep.subr.mxu0 0.0
        %363 = vmatpush1.msra.mxu0 0.0
        %364 = vmatprep.subr.mxu0 0.0
        %365 = vmatpush1.msra.mxu0 0.0
        %366 = vmatprep.subr.mxu0 0.0
        %367 = vmatpush1.msra.mxu0 0.0
        %368 = vmatprep.subr.mxu0 0.0
        %369 = vmatpush1.msra.mxu0 0.0
        %370 = vmatprep.subr.mxu0 0.0
        %371 = vmatpush1.msra.mxu0 0.0
        %372 = vmatprep.subr.mxu0 0.0
        %373 = vmatpush1.msra.mxu0 0.0
        %374 = vmatprep.subr.mxu0 0.0
        %375 = vmatpush1.msra.mxu0 0.0
        %376 = vmatprep.subr.mxu0 0.0
        %377 = vmatpush1.msra.mxu0 0.0
        %378 = vmatprep.subr.mxu0 0.0
        %379 = vmatpush1.msra.mxu0 0.0
        %380 = vmatprep.subr.mxu0 0.0
        %381 = vmatpush1.msra.mxu0 0.0
        %382 = vmatprep.subr.mxu0 0.0
        %383 = vmatpush1.msra.mxu0 0.0
        %384 = vmatprep.subr.mxu0 0.0
        %385 = vmatpush1.msra.mxu0 0.0
        %386 = vmatprep.subr.mxu0 0.0
        %387 = vmatpush1.msra.mxu0 0.0
        %388 = vmatprep.subr.mxu0 0.0
        %389 = vmatpush1.msra.mxu0 0.0
        %390 = vmatprep.subr.mxu0 0.0
        %391 = vmatpush1.msra.mxu0 0.0
        %392 = vmatprep.subr.mxu0 0.0
        %393 = vmatpush1.msra.mxu0 0.0
        %394 = vmatprep.subr.mxu0 0.0
        %395 = vmatpush1.msra.mxu0 0.0
        %396 = vmatprep.subr.mxu0 0.0
        %397 = vmatpush1.msra.mxu0 0.0
        %398 = vmatprep.subr.mxu0 0.0
        %399 = vmatpush1.msra.mxu0 0.0
        %400 = vmatprep.subr.mxu0 0.0
        %401 = vmatpush1.msra.mxu0 0.0
        %402 = vmatprep.subr.mxu0 0.0
        %403 = vmatpush1.msra.mxu0 0.0
        %404 = vmatprep.subr.mxu0 0.0
        %405 = vmatpush1.msra.mxu0 0.0
        %406 = vmatprep.subr.mxu0 0.0
        %407 = vmatpush1.msra.mxu0 0.0
        %408 = vmatprep.subr.mxu0 0.0
        %409 = vmatpush1.msra.mxu0 0.0
        %410 = vmatprep.mubr.f32.mxu0 0.0
        %411 = vmatmul.mubr.f32.gmra.mrb[0].mxu0 %v344
        %v412 = vpop.f32.mrb[0].mxu0
        %v413 = vadd.f32 %v340, %v412
        %v414 = vpop.f32.mrb[0].mxu0
        %415 = vdwg.mxu0
        %v416 = vadd.f32 %v329, %v413
        %v417 = vtanh.pop %v416
        %v418 = vxor.u32 %v416, 2147483648
        %v419 = vmul.f32 %v418, 1.442695
        %v420 = vpow.pop %v419
        %v421 = vadd.f32 %v420, 1.0
        %v422 = vrcp.pop %v421
        %v423 = vmul.f32 1.0, %v422
        %425 = vrot.lane.b32.xlu0 %v413, 32
        %v426 = vpop.permute.xlu0 %425
        %v428 = vadd.f32 %v329, %v426
        %v429 = vxor.u32 %v428, 2147483648
        %v430 = vmul.f32 %v429, 1.442695
        %v431 = vpow.pop %v430
        %v432 = vadd.f32 %v431, 1.0
        %v433 = vrcp.pop %v432
        %v434 = vmul.f32 1.0, %v433
        %436 = vrot.lane.b32.xlu0 %v423, 96
        %v437 = vpop.permute.xlu0 %436
        %v439 = vmul.f32 %v417, %v437
        %441 = vrot.lane.b32.xlu0 %v434, 64
        %v442 = vpop.permute.xlu0 %441
        %v444 = vmul.f32 %v328, %v442
        %v445 = vadd.f32 %v439, %v444
        %v446 = vmul.f32 %v327, %v445
        %s447 = scalar_lea.vmem %s3, 32
        %v448 = vld [vmem:[%s447] sm:$0xff]
        %v449 = vld [vmem:[%s447 + $0x8] sm:$0xff]
        %v450 = vld [vmem:[%s447 + $0x10] sm:$0xff]
        %v451 = vld [vmem:[%s447 + $0x18] sm:$0xff]
        %s452 = scalar_lea.vmem %s4, 1
        %v453 = vld [vmem:[%s452] sm:$0x1]
        %v455 = vlaneseq
        %v456 = vshrl.u32 %v455, 7
        %v457 = vsub.s32 0, %v456
        %v458 = vrot.slane %v453, %v457
        %v461 = vsel %vm342, %v446, 0
        %463 = vmatprep.subr.mxu0 0.0
        %464 = vmatpush1.msra.mxu0 %v448
        %465 = vmatprep.subr.mxu0 0.0
        %466 = vmatpush1.msra.mxu0 %v449
        %467 = vmatprep.subr.mxu0 0.0
        %468 = vmatpush1.msra.mxu0 %v450
        %469 = vmatprep.subr.mxu0 0.0
        %470 = vmatpush1.msra.mxu0 %v451
        %471 = vmatprep.subr.mxu0 0.0
        %472 = vmatpush1.msra.mxu0 0.0
        %473 = vmatprep.subr.mxu0 0.0
        %474 = vmatpush1.msra.mxu0 0.0
        %475 = vmatprep.subr.mxu0 0.0
        %476 = vmatpush1.msra.mxu0 0.0
        %477 = vmatprep.subr.mxu0 0.0
        %478 = vmatpush1.msra.mxu0 0.0
        %479 = vmatprep.subr.mxu0 0.0
        %480 = vmatpush1.msra.mxu0 0.0
        %481 = vmatprep.subr.mxu0 0.0
        %482 = vmatpush1.msra.mxu0 0.0
        %483 = vmatprep.subr.mxu0 0.0
        %484 = vmatpush1.msra.mxu0 0.0
        %485 = vmatprep.subr.mxu0 0.0
        %486 = vmatpush1.msra.mxu0 0.0
        %487 = vmatprep.subr.mxu0 0.0
        %488 = vmatpush1.msra.mxu0 0.0
        %489 = vmatprep.subr.mxu0 0.0
        %490 = vmatpush1.msra.mxu0 0.0
        %491 = vmatprep.subr.mxu0 0.0
        %492 = vmatpush1.msra.mxu0 0.0
        %493 = vmatprep.subr.mxu0 0.0
        %494 = vmatpush1.msra.mxu0 0.0
        %495 = vmatprep.subr.mxu0 0.0
        %496 = vmatpush1.msra.mxu0 0.0
        %497 = vmatprep.subr.mxu0 0.0
        %498 = vmatpush1.msra.mxu0 0.0
        %499 = vmatprep.subr.mxu0 0.0
        %500 = vmatpush1.msra.mxu0 0.0
        %501 = vmatprep.subr.mxu0 0.0
        %502 = vmatpush1.msra.mxu0 0.0
        %503 = vmatprep.subr.mxu0 0.0
        %504 = vmatpush1.msra.mxu0 0.0
        %505 = vmatprep.subr.mxu0 0.0
        %506 = vmatpush1.msra.mxu0 0.0
        %507 = vmatprep.subr.mxu0 0.0
        %508 = vmatpush1.msra.mxu0 0.0
        %509 = vmatprep.subr.mxu0 0.0
        %510 = vmatpush1.msra.mxu0 0.0
        %511 = vmatprep.subr.mxu0 0.0
        %512 = vmatpush1.msra.mxu0 0.0
        %513 = vmatprep.subr.mxu0 0.0
        %514 = vmatpush1.msra.mxu0 0.0
        %515 = vmatprep.subr.mxu0 0.0
        %516 = vmatpush1.msra.mxu0 0.0
        %517 = vmatprep.subr.mxu0 0.0
        %518 = vmatpush1.msra.mxu0 0.0
        %519 = vmatprep.subr.mxu0 0.0
        %520 = vmatpush1.msra.mxu0 0.0
        %521 = vmatprep.subr.mxu0 0.0
        %522 = vmatpush1.msra.mxu0 0.0
        %523 = vmatprep.subr.mxu0 0.0
        %524 = vmatpush1.msra.mxu0 0.0
        %525 = vmatprep.subr.mxu0 0.0
        %526 = vmatpush1.msra.mxu0 0.0
        %527 = vmatprep.mubr.f32.mxu0 0.0
        %528 = vmatmul.mubr.f32.gmra.mrb[0].mxu0 %v461
        %v529 = vpop.f32.mrb[0].mxu0
        %v530 = vadd.f32 %v458, %v529
        %v531 = vpop.f32.mrb[0].mxu0
        %532 = vdwg.mxu0
        %v533 = vtanh.pop %v530
        %v534 = vxor.u32 %v530, 2147483648
        %v535 = vmul.f32 %v534, 1.442695
        %v536 = vpow.pop %v535
        %v537 = vadd.f32 %v536, 1.0
        %v538 = vrcp.pop %v537
        %v539 = vmul.f32 1.0, %v538
        %v540 = vadd.f32 %v533, %v445
        %542 = vrot.lane.b32.xlu0 %v539, 96
        %v543 = vpop.permute.xlu0 %542
        %v545 = vmul.f32 %v540, %v543
        %546 = vst.msk [vmem:[%s309] sm:$0xff] %vm342, %v545
        %s547 = scalar_lea.vmem %s278, 8 [#allocation3]
        %v548 = vld [vmem:[%s547] sm:$0xff]
        %v549 = vmul.f32 %v327, %v545
        %v550 = vld [vmem:[%s3] sm:$0xff]
        %v551 = vld [vmem:[%s3 + $0x8] sm:$0xff]
        %v552 = vld [vmem:[%s3 + $0x10] sm:$0xff]
        %v553 = vld [vmem:[%s3 + $0x18] sm:$0xff]
        %v554 = vld [vmem:[%s4] sm:$0x1]
        %v556 = vlaneseq
        %v557 = vshrl.u32 %v556, 7
        %v558 = vsub.s32 0, %v557
        %v559 = vrot.slane %v554, %v558
        %v562 = vsel %vm342, %v549, 0
        %564 = vmatprep.subr.mxu0 0.0
        %565 = vmatpush1.msra.mxu0 %v550
        %566 = vmatprep.subr.mxu0 0.0
        %567 = vmatpush1.msra.mxu0 %v551
        %568 = vmatprep.subr.mxu0 0.0
        %569 = vmatpush1.msra.mxu0 %v552
        %570 = vmatprep.subr.mxu0 0.0
        %571 = vmatpush1.msra.mxu0 %v553
        %572 = vmatprep.subr.mxu0 0.0
        %573 = vmatpush1.msra.mxu0 0.0
        %574 = vmatprep.subr.mxu0 0.0
        %575 = vmatpush1.msra.mxu0 0.0
        %576 = vmatprep.subr.mxu0 0.0
        %577 = vmatpush1.msra.mxu0 0.0
        %578 = vmatprep.subr.mxu0 0.0
        %579 = vmatpush1.msra.mxu0 0.0
        %580 = vmatprep.subr.mxu0 0.0
        %581 = vmatpush1.msra.mxu0 0.0
        %582 = vmatprep.subr.mxu0 0.0
        %583 = vmatpush1.msra.mxu0 0.0
        %584 = vmatprep.subr.mxu0 0.0
        %585 = vmatpush1.msra.mxu0 0.0
        %586 = vmatprep.subr.mxu0 0.0
        %587 = vmatpush1.msra.mxu0 0.0
        %588 = vmatprep.subr.mxu0 0.0
        %589 = vmatpush1.msra.mxu0 0.0
        %590 = vmatprep.subr.mxu0 0.0
        %591 = vmatpush1.msra.mxu0 0.0
        %592 = vmatprep.subr.mxu0 0.0
        %593 = vmatpush1.msra.mxu0 0.0
        %594 = vmatprep.subr.mxu0 0.0
        %595 = vmatpush1.msra.mxu0 0.0
        %596 = vmatprep.subr.mxu0 0.0
        %597 = vmatpush1.msra.mxu0 0.0
        %598 = vmatprep.subr.mxu0 0.0
        %599 = vmatpush1.msra.mxu0 0.0
        %600 = vmatprep.subr.mxu0 0.0
        %601 = vmatpush1.msra.mxu0 0.0
        %602 = vmatprep.subr.mxu0 0.0
        %603 = vmatpush1.msra.mxu0 0.0
        %604 = vmatprep.subr.mxu0 0.0
        %605 = vmatpush1.msra.mxu0 0.0
        %606 = vmatprep.subr.mxu0 0.0
        %607 = vmatpush1.msra.mxu0 0.0
        %608 = vmatprep.subr.mxu0 0.0
        %609 = vmatpush1.msra.mxu0 0.0
        %610 = vmatprep.subr.mxu0 0.0
        %611 = vmatpush1.msra.mxu0 0.0
        %612 = vmatprep.subr.mxu0 0.0
        %613 = vmatpush1.msra.mxu0 0.0
        %614 = vmatprep.subr.mxu0 0.0
        %615 = vmatpush1.msra.mxu0 0.0
        %616 = vmatprep.subr.mxu0 0.0
        %617 = vmatpush1.msra.mxu0 0.0
        %618 = vmatprep.subr.mxu0 0.0
        %619 = vmatpush1.msra.mxu0 0.0
        %620 = vmatprep.subr.mxu0 0.0
        %621 = vmatpush1.msra.mxu0 0.0
        %622 = vmatprep.subr.mxu0 0.0
        %623 = vmatpush1.msra.mxu0 0.0
        %624 = vmatprep.subr.mxu0 0.0
        %625 = vmatpush1.msra.mxu0 0.0
        %626 = vmatprep.subr.mxu0 0.0
        %627 = vmatpush1.msra.mxu0 0.0
        %628 = vmatprep.mubr.f32.mxu0 0.0
        %629 = vmatmul.mubr.f32.gmra.mrb[0].mxu0 %v562
        %v630 = vpop.f32.mrb[0].mxu0
        %v631 = vadd.f32 %v559, %v630
        %v632 = vpop.f32.mrb[0].mxu0
        %633 = vdwg.mxu0
        %v634 = vadd.f32 %v548, %v631
        %v635 = vtanh.pop %v634
        %v636 = vxor.u32 %v634, 2147483648
        %v637 = vmul.f32 %v636, 1.442695
        %v638 = vpow.pop %v637
        %v639 = vadd.f32 %v638, 1.0
        %v640 = vrcp.pop %v639
        %v641 = vmul.f32 1.0, %v640
        %643 = vrot.lane.b32.xlu0 %v631, 32
        %v644 = vpop.permute.xlu0 %643
        %v646 = vadd.f32 %v548, %v644
        %v647 = vxor.u32 %v646, 2147483648
        %v648 = vmul.f32 %v647, 1.442695
        %v649 = vpow.pop %v648
        %v650 = vadd.f32 %v649, 1.0
        %v651 = vrcp.pop %v650
        %v652 = vmul.f32 1.0, %v651
        %654 = vrot.lane.b32.xlu0 %v641, 96
        %v655 = vpop.permute.xlu0 %654
        %v657 = vmul.f32 %v635, %v655
        %659 = vrot.lane.b32.xlu0 %v652, 64
        %v660 = vpop.permute.xlu0 %659
        %v662 = vmul.f32 %v545, %v660
        %v663 = vadd.f32 %v657, %v662
        %v664 = vmul.f32 %v327, %v663
        %v665 = vld [vmem:[%s447] sm:$0xff]
        %v666 = vld [vmem:[%s447 + $0x8] sm:$0xff]
        %v667 = vld [vmem:[%s447 + $0x10] sm:$0xff]
        %v668 = vld [vmem:[%s447 + $0x18] sm:$0xff]
        %v669 = vld [vmem:[%s452] sm:$0x1]
        %v671 = vlaneseq
        %v672 = vshrl.u32 %v671, 7
        %v673 = vsub.s32 0, %v672
        %v674 = vrot.slane %v669, %v673
        %v677 = vsel %vm342, %v664, 0
        %679 = vmatprep.subr.mxu0 0.0
        %680 = vmatpush1.msra.mxu0 %v665
        %681 = vmatprep.subr.mxu0 0.0
        %682 = vmatpush1.msra.mxu0 %v666
        %683 = vmatprep.subr.mxu0 0.0
        %684 = vmatpush1.msra.mxu0 %v667
        %685 = vmatprep.subr.mxu0 0.0
        %686 = vmatpush1.msra.mxu0 %v668
        %687 = vmatprep.subr.mxu0 0.0
        %688 = vmatpush1.msra.mxu0 0.0
        %689 = vmatprep.subr.mxu0 0.0
        %690 = vmatpush1.msra.mxu0 0.0
        %691 = vmatprep.subr.mxu0 0.0
        %692 = vmatpush1.msra.mxu0 0.0
        %693 = vmatprep.subr.mxu0 0.0
        %694 = vmatpush1.msra.mxu0 0.0
        %695 = vmatprep.subr.mxu0 0.0
        %696 = vmatpush1.msra.mxu0 0.0
        %697 = vmatprep.subr.mxu0 0.0
        %698 = vmatpush1.msra.mxu0 0.0
        %699 = vmatprep.subr.mxu0 0.0
        %700 = vmatpush1.msra.mxu0 0.0
        %701 = vmatprep.subr.mxu0 0.0
        %702 = vmatpush1.msra.mxu0 0.0
        %703 = vmatprep.subr.mxu0 0.0
        %704 = vmatpush1.msra.mxu0 0.0
        %705 = vmatprep.subr.mxu0 0.0
        %706 = vmatpush1.msra.mxu0 0.0
        %707 = vmatprep.subr.mxu0 0.0
        %708 = vmatpush1.msra.mxu0 0.0
        %709 = vmatprep.subr.mxu0 0.0
        %710 = vmatpush1.msra.mxu0 0.0
        %711 = vmatprep.subr.mxu0 0.0
        %712 = vmatpush1.msra.mxu0 0.0
        %713 = vmatprep.subr.mxu0 0.0
        %714 = vmatpush1.msra.mxu0 0.0
        %715 = vmatprep.subr.mxu0 0.0
        %716 = vmatpush1.msra.mxu0 0.0
        %717 = vmatprep.subr.mxu0 0.0
        %718 = vmatpush1.msra.mxu0 0.0
        %719 = vmatprep.subr.mxu0 0.0
        %720 = vmatpush1.msra.mxu0 0.0
        %721 = vmatprep.subr.mxu0 0.0
        %722 = vmatpush1.msra.mxu0 0.0
        %723 = vmatprep.subr.mxu0 0.0
        %724 = vmatpush1.msra.mxu0 0.0
        %725 = vmatprep.subr.mxu0 0.0
        %726 = vmatpush1.msra.mxu0 0.0
        %727 = vmatprep.subr.mxu0 0.0
        %728 = vmatpush1.msra.mxu0 0.0
        %729 = vmatprep.subr.mxu0 0.0
        %730 = vmatpush1.msra.mxu0 0.0
        %731 = vmatprep.subr.mxu0 0.0
        %732 = vmatpush1.msra.mxu0 0.0
        %733 = vmatprep.subr.mxu0 0.0
        %734 = vmatpush1.msra.mxu0 0.0
        %735 = vmatprep.subr.mxu0 0.0
        %736 = vmatpush1.msra.mxu0 0.0
        %737 = vmatprep.subr.mxu0 0.0
        %738 = vmatpush1.msra.mxu0 0.0
        %739 = vmatprep.subr.mxu0 0.0
        %740 = vmatpush1.msra.mxu0 0.0
        %741 = vmatprep.subr.mxu0 0.0
        %742 = vmatpush1.msra.mxu0 0.0
        %743 = vmatprep.mubr.f32.mxu0 0.0
        %744 = vmatmul.mubr.f32.gmra.mrb[0].mxu0 %v677
        %v745 = vpop.f32.mrb[0].mxu0
        %v746 = vadd.f32 %v674, %v745
        %v747 = vpop.f32.mrb[0].mxu0
        %748 = vdwg.mxu0
        %v749 = vtanh.pop %v746
        %v750 = vxor.u32 %v746, 2147483648
        %v751 = vmul.f32 %v750, 1.442695
        %v752 = vpow.pop %v751
        %v753 = vadd.f32 %v752, 1.0
        %v754 = vrcp.pop %v753
        %v755 = vmul.f32 1.0, %v754
        %v756 = vadd.f32 %v749, %v663
        %758 = vrot.lane.b32.xlu0 %v755, 96
        %v759 = vpop.permute.xlu0 %758
        %v761 = vmul.f32 %v756, %v759
        %s762 = scalar_lea.vmem %s309, 8 [#allocation4]
        %763 = vst.msk [vmem:[%s762] sm:$0xff] %vm342, %v761
        %s764 = scalar_lea.vmem %s278, 16 [#allocation3]
        %v765 = vld [vmem:[%s764] sm:$0xff]
        %v766 = vmul.f32 %v327, %v761
        %v767 = vld [vmem:[%s3] sm:$0xff]
        %v768 = vld [vmem:[%s3 + $0x8] sm:$0xff]
        %v769 = vld [vmem:[%s3 + $0x10] sm:$0xff]
        %v770 = vld [vmem:[%s3 + $0x18] sm:$0xff]
        %v771 = vld [vmem:[%s4] sm:$0x1]
        %v773 = vlaneseq
        %v774 = vshrl.u32 %v773, 7
        %v775 = vsub.s32 0, %v774
        %v776 = vrot.slane %v771, %v775
        %v779 = vsel %vm342, %v766, 0
        %781 = vmatprep.subr.mxu0 0.0
        %782 = vmatpush1.msra.mxu0 %v767
        %783 = vmatprep.subr.mxu0 0.0
        %784 = vmatpush1.msra.mxu0 %v768
        %785 = vmatprep.subr.mxu0 0.0
        %786 = vmatpush1.msra.mxu0 %v769
        %787 = vmatprep.subr.mxu0 0.0
        %788 = vmatpush1.msra.mxu0 %v770
        %789 = vmatprep.subr.mxu0 0.0
        %790 = vmatpush1.msra.mxu0 0.0
        %791 = vmatprep.subr.mxu0 0.0
        %792 = vmatpush1.msra.mxu0 0.0
        %793 = vmatprep.subr.mxu0 0.0
        %794 = vmatpush1.msra.mxu0 0.0
        %795 = vmatprep.subr.mxu0 0.0
        %796 = vmatpush1.msra.mxu0 0.0
        %797 = vmatprep.subr.mxu0 0.0
        %798 = vmatpush1.msra.mxu0 0.0
        %799 = vmatprep.subr.mxu0 0.0
        %800 = vmatpush1.msra.mxu0 0.0
        %801 = vmatprep.subr.mxu0 0.0
        %802 = vmatpush1.msra.mxu0 0.0
        %803 = vmatprep.subr.mxu0 0.0
        %804 = vmatpush1.msra.mxu0 0.0
        %805 = vmatprep.subr.mxu0 0.0
        %806 = vmatpush1.msra.mxu0 0.0
        %807 = vmatprep.subr.mxu0 0.0
        %808 = vmatpush1.msra.mxu0 0.0
        %809 = vmatprep.subr.mxu0 0.0
        %810 = vmatpush1.msra.mxu0 0.0
        %811 = vmatprep.subr.mxu0 0.0
        %812 = vmatpush1.msra.mxu0 0.0
        %813 = vmatprep.subr.mxu0 0.0
        %814 = vmatpush1.msra.mxu0 0.0
        %815 = vmatprep.subr.mxu0 0.0
        %816 = vmatpush1.msra.mxu0 0.0
        %817 = vmatprep.subr.mxu0 0.0
        %818 = vmatpush1.msra.mxu0 0.0
        %819 = vmatprep.subr.mxu0 0.0
        %820 = vmatpush1.msra.mxu0 0.0
        %821 = vmatprep.subr.mxu0 0.0
        %822 = vmatpush1.msra.mxu0 0.0
        %823 = vmatprep.subr.mxu0 0.0
        %824 = vmatpush1.msra.mxu0 0.0
        %825 = vmatprep.subr.mxu0 0.0
        %826 = vmatpush1.msra.mxu0 0.0
        %827 = vmatprep.subr.mxu0 0.0
        %828 = vmatpush1.msra.mxu0 0.0
        %829 = vmatprep.subr.mxu0 0.0
        %830 = vmatpush1.msra.mxu0 0.0
        %831 = vmatprep.subr.mxu0 0.0
        %832 = vmatpush1.msra.mxu0 0.0
        %833 = vmatprep.subr.mxu0 0.0
        %834 = vmatpush1.msra.mxu0 0.0
        %835 = vmatprep.subr.mxu0 0.0
        %836 = vmatpush1.msra.mxu0 0.0
        %837 = vmatprep.subr.mxu0 0.0
        %838 = vmatpush1.msra.mxu0 0.0
        %839 = vmatprep.subr.mxu0 0.0
        %840 = vmatpush1.msra.mxu0 0.0
        %841 = vmatprep.subr.mxu0 0.0
        %842 = vmatpush1.msra.mxu0 0.0
        %843 = vmatprep.subr.mxu0 0.0
        %844 = vmatpush1.msra.mxu0 0.0
        %845 = vmatprep.mubr.f32.mxu0 0.0
        %846 = vmatmul.mubr.f32.gmra.mrb[0].mxu0 %v779
        %v847 = vpop.f32.mrb[0].mxu0
        %v848 = vadd.f32 %v776, %v847
        %v849 = vpop.f32.mrb[0].mxu0
        %850 = vdwg.mxu0
        %v851 = vadd.f32 %v765, %v848
        %v852 = vtanh.pop %v851
        %v853 = vxor.u32 %v851, 2147483648
        %v854 = vmul.f32 %v853, 1.442695
        %v855 = vpow.pop %v854
        %v856 = vadd.f32 %v855, 1.0
        %v857 = vrcp.pop %v856
        %v858 = vmul.f32 1.0, %v857
        %860 = vrot.lane.b32.xlu0 %v848, 32
        %v861 = vpop.permute.xlu0 %860
        %v863 = vadd.f32 %v765, %v861
        %v864 = vxor.u32 %v863, 2147483648
        %v865 = vmul.f32 %v864, 1.442695
        %v866 = vpow.pop %v865
        %v867 = vadd.f32 %v866, 1.0
        %v868 = vrcp.pop %v867
        %v869 = vmul.f32 1.0, %v868
        %871 = vrot.lane.b32.xlu0 %v858, 96
        %v872 = vpop.permute.xlu0 %871
        %v874 = vmul.f32 %v852, %v872
        %876 = vrot.lane.b32.xlu0 %v869, 64
        %v877 = vpop.permute.xlu0 %876
        %v879 = vmul.f32 %v761, %v877
        %v880 = vadd.f32 %v874, %v879
        %v881 = vmul.f32 %v327, %v880
        %v882 = vld [vmem:[%s447] sm:$0xff]
        %v883 = vld [vmem:[%s447 + $0x8] sm:$0xff]
        %v884 = vld [vmem:[%s447 + $0x10] sm:$0xff]
        %v885 = vld [vmem:[%s447 + $0x18] sm:$0xff]
        %v886 = vld [vmem:[%s452] sm:$0x1]
        %v888 = vlaneseq
        %v889 = vshrl.u32 %v888, 7
        %v890 = vsub.s32 0, %v889
        %v891 = vrot.slane %v886, %v890
        %v894 = vsel %vm342, %v881, 0
        %896 = vmatprep.subr.mxu0 0.0
        %897 = vmatpush1.msra.mxu0 %v882
        %898 = vmatprep.subr.mxu0 0.0
        %899 = vmatpush1.msra.mxu0 %v883
        %900 = vmatprep.subr.mxu0 0.0
        %901 = vmatpush1.msra.mxu0 %v884
        %902 = vmatprep.subr.mxu0 0.0
        %903 = vmatpush1.msra.mxu0 %v885
        %904 = vmatprep.subr.mxu0 0.0
        %905 = vmatpush1.msra.mxu0 0.0
        %906 = vmatprep.subr.mxu0 0.0
        %907 = vmatpush1.msra.mxu0 0.0
        %908 = vmatprep.subr.mxu0 0.0
        %909 = vmatpush1.msra.mxu0 0.0
        %910 = vmatprep.subr.mxu0 0.0
        %911 = vmatpush1.msra.mxu0 0.0
        %912 = vmatprep.subr.mxu0 0.0
        %913 = vmatpush1.msra.mxu0 0.0
        %914 = vmatprep.subr.mxu0 0.0
        %915 = vmatpush1.msra.mxu0 0.0
        %916 = vmatprep.subr.mxu0 0.0
        %917 = vmatpush1.msra.mxu0 0.0
        %918 = vmatprep.subr.mxu0 0.0
        %919 = vmatpush1.msra.mxu0 0.0
        %920 = vmatprep.subr.mxu0 0.0
        %921 = vmatpush1.msra.mxu0 0.0
        %922 = vmatprep.subr.mxu0 0.0
        %923 = vmatpush1.msra.mxu0 0.0
        %924 = vmatprep.subr.mxu0 0.0
        %925 = vmatpush1.msra.mxu0 0.0
        %926 = vmatprep.subr.mxu0 0.0
        %927 = vmatpush1.msra.mxu0 0.0
        %928 = vmatprep.subr.mxu0 0.0
        %929 = vmatpush1.msra.mxu0 0.0
        %930 = vmatprep.subr.mxu0 0.0
        %931 = vmatpush1.msra.mxu0 0.0
        %932 = vmatprep.subr.mxu0 0.0
        %933 = vmatpush1.msra.mxu0 0.0
        %934 = vmatprep.subr.mxu0 0.0
        %935 = vmatpush1.msra.mxu0 0.0
        %936 = vmatprep.subr.mxu0 0.0
        %937 = vmatpush1.msra.mxu0 0.0
        %938 = vmatprep.subr.mxu0 0.0
        %939 = vmatpush1.msra.mxu0 0.0
        %940 = vmatprep.subr.mxu0 0.0
        %941 = vmatpush1.msra.mxu0 0.0
        %942 = vmatprep.subr.mxu0 0.0
        %943 = vmatpush1.msra.mxu0 0.0
        %944 = vmatprep.subr.mxu0 0.0
        %945 = vmatpush1.msra.mxu0 0.0
        %946 = vmatprep.subr.mxu0 0.0
        %947 = vmatpush1.msra.mxu0 0.0
        %948 = vmatprep.subr.mxu0 0.0
        %949 = vmatpush1.msra.mxu0 0.0
        %950 = vmatprep.subr.mxu0 0.0
        %951 = vmatpush1.msra.mxu0 0.0
        %952 = vmatprep.subr.mxu0 0.0
        %953 = vmatpush1.msra.mxu0 0.0
        %954 = vmatprep.subr.mxu0 0.0
        %955 = vmatpush1.msra.mxu0 0.0
        %956 = vmatprep.subr.mxu0 0.0
        %957 = vmatpush1.msra.mxu0 0.0
        %958 = vmatprep.subr.mxu0 0.0
        %959 = vmatpush1.msra.mxu0 0.0
        %960 = vmatprep.mubr.f32.mxu0 0.0
        %961 = vmatmul.mubr.f32.gmra.mrb[0].mxu0 %v894
        %v962 = vpop.f32.mrb[0].mxu0
        %v963 = vadd.f32 %v891, %v962
        %v964 = vpop.f32.mrb[0].mxu0
        %965 = vdwg.mxu0
        %v966 = vtanh.pop %v963
        %v967 = vxor.u32 %v963, 2147483648
        %v968 = vmul.f32 %v967, 1.442695
        %v969 = vpow.pop %v968
        %v970 = vadd.f32 %v969, 1.0
        %v971 = vrcp.pop %v970
        %v972 = vmul.f32 1.0, %v971
        %v973 = vadd.f32 %v966, %v880
        %975 = vrot.lane.b32.xlu0 %v972, 96
        %v976 = vpop.permute.xlu0 %975
        %v978 = vmul.f32 %v973, %v976
        %s979 = scalar_lea.vmem %s309, 16 [#allocation4]
        %980 = vst.msk [vmem:[%s979] sm:$0xff] %vm342, %v978
        %s981 = scalar_lea.vmem %s278, 24 [#allocation3]
        %v982 = vld [vmem:[%s981] sm:$0xff]
        %v983 = vmul.f32 %v327, %v978
        %v984 = vld [vmem:[%s3] sm:$0xff]
        %v985 = vld [vmem:[%s3 + $0x8] sm:$0xff]
        %v986 = vld [vmem:[%s3 + $0x10] sm:$0xff]
        %v987 = vld [vmem:[%s3 + $0x18] sm:$0xff]
        %v988 = vld [vmem:[%s4] sm:$0x1]
        %v990 = vlaneseq
        %v991 = vshrl.u32 %v990, 7
        %v992 = vsub.s32 0, %v991
        %v993 = vrot.slane %v988, %v992
        %v996 = vsel %vm342, %v983, 0
        %998 = vmatprep.subr.mxu0 0.0
        %999 = vmatpush1.msra.mxu0 %v984
        %1000 = vmatprep.subr.mxu0 0.0
        %1001 = vmatpush1.msra.mxu0 %v985
        %1002 = vmatprep.subr.mxu0 0.0
        %1003 = vmatpush1.msra.mxu0 %v986
        %1004 = vmatprep.subr.mxu0 0.0
        %1005 = vmatpush1.msra.mxu0 %v987
        %1006 = vmatprep.subr.mxu0 0.0
        %1007 = vmatpush1.msra.mxu0 0.0
        %1008 = vmatprep.subr.mxu0 0.0
        %1009 = vmatpush1.msra.mxu0 0.0
        %1010 = vmatprep.subr.mxu0 0.0
        %1011 = vmatpush1.msra.mxu0 0.0
        %1012 = vmatprep.subr.mxu0 0.0
        %1013 = vmatpush1.msra.mxu0 0.0
        %1014 = vmatprep.subr.mxu0 0.0
        %1015 = vmatpush1.msra.mxu0 0.0
        %1016 = vmatprep.subr.mxu0 0.0
        %1017 = vmatpush1.msra.mxu0 0.0
        %1018 = vmatprep.subr.mxu0 0.0
        %1019 = vmatpush1.msra.mxu0 0.0
        %1020 = vmatprep.subr.mxu0 0.0
        %1021 = vmatpush1.msra.mxu0 0.0
        %1022 = vmatprep.subr.mxu0 0.0
        %1023 = vmatpush1.msra.mxu0 0.0
        %1024 = vmatprep.subr.mxu0 0.0
        %1025 = vmatpush1.msra.mxu0 0.0
        %1026 = vmatprep.subr.mxu0 0.0
        %1027 = vmatpush1.msra.mxu0 0.0
        %1028 = vmatprep.subr.mxu0 0.0
        %1029 = vmatpush1.msra.mxu0 0.0
        %1030 = vmatprep.subr.mxu0 0.0
        %1031 = vmatpush1.msra.mxu0 0.0
        %1032 = vmatprep.subr.mxu0 0.0
        %1033 = vmatpush1.msra.mxu0 0.0
        %1034 = vmatprep.subr.mxu0 0.0
        %1035 = vmatpush1.msra.mxu0 0.0
        %1036 = vmatprep.subr.mxu0 0.0
        %1037 = vmatpush1.msra.mxu0 0.0
        %1038 = vmatprep.subr.mxu0 0.0
        %1039 = vmatpush1.msra.mxu0 0.0
        %1040 = vmatprep.subr.mxu0 0.0
        %1041 = vmatpush1.msra.mxu0 0.0
        %1042 = vmatprep.subr.mxu0 0.0
        %1043 = vmatpush1.msra.mxu0 0.0
        %1044 = vmatprep.subr.mxu0 0.0
        %1045 = vmatpush1.msra.mxu0 0.0
        %1046 = vmatprep.subr.mxu0 0.0
        %1047 = vmatpush1.msra.mxu0 0.0
        %1048 = vmatprep.subr.mxu0 0.0
        %1049 = vmatpush1.msra.mxu0 0.0
        %1050 = vmatprep.subr.mxu0 0.0
        %1051 = vmatpush1.msra.mxu0 0.0
        %1052 = vmatprep.subr.mxu0 0.0
        %1053 = vmatpush1.msra.mxu0 0.0
        %1054 = vmatprep.subr.mxu0 0.0
        %1055 = vmatpush1.msra.mxu0 0.0
        %1056 = vmatprep.subr.mxu0 0.0
        %1057 = vmatpush1.msra.mxu0 0.0
        %1058 = vmatprep.subr.mxu0 0.0
        %1059 = vmatpush1.msra.mxu0 0.0
        %1060 = vmatprep.subr.mxu0 0.0
        %1061 = vmatpush1.msra.mxu0 0.0
        %1062 = vmatprep.mubr.f32.mxu0 0.0
        %1063 = vmatmul.mubr.f32.gmra.mrb[0].mxu0 %v996
        %v1064 = vpop.f32.mrb[0].mxu0
        %v1065 = vadd.f32 %v993, %v1064
        %v1066 = vpop.f32.mrb[0].mxu0
        %1067 = vdwg.mxu0
        %v1068 = vadd.f32 %v982, %v1065
        %v1069 = vtanh.pop %v1068
        %v1070 = vxor.u32 %v1068, 2147483648
        %v1071 = vmul.f32 %v1070, 1.442695
        %v1072 = vpow.pop %v1071
        %v1073 = vadd.f32 %v1072, 1.0
        %v1074 = vrcp.pop %v1073
        %v1075 = vmul.f32 1.0, %v1074
        %1077 = vrot.lane.b32.xlu0 %v1065, 32
        %v1078 = vpop.permute.xlu0 %1077
        %v1080 = vadd.f32 %v982, %v1078
        %v1081 = vxor.u32 %v1080, 2147483648
        %v1082 = vmul.f32 %v1081, 1.442695
        %v1083 = vpow.pop %v1082
        %v1084 = vadd.f32 %v1083, 1.0
        %v1085 = vrcp.pop %v1084
        %v1086 = vmul.f32 1.0, %v1085
        %1088 = vrot.lane.b32.xlu0 %v1075, 96
        %v1089 = vpop.permute.xlu0 %1088
        %v1091 = vmul.f32 %v1069, %v1089
        %1093 = vrot.lane.b32.xlu0 %v1086, 64
        %v1094 = vpop.permute.xlu0 %1093
        %v1096 = vmul.f32 %v978, %v1094
        %v1097 = vadd.f32 %v1091, %v1096
        %v1098 = vmul.f32 %v327, %v1097
        %v1099 = vld [vmem:[%s447] sm:$0xff]
        %v1100 = vld [vmem:[%s447 + $0x8] sm:$0xff]
        %v1101 = vld [vmem:[%s447 + $0x10] sm:$0xff]
        %v1102 = vld [vmem:[%s447 + $0x18] sm:$0xff]
        %v1103 = vld [vmem:[%s452] sm:$0x1]
        %v1105 = vlaneseq
        %v1106 = vshrl.u32 %v1105, 7
        %v1107 = vsub.s32 0, %v1106
        %v1108 = vrot.slane %v1103, %v1107
        %v1111 = vsel %vm342, %v1098, 0
        %1113 = vmatprep.subr.mxu0 0.0
        %1114 = vmatpush1.msra.mxu0 %v1099
        %1115 = vmatprep.subr.mxu0 0.0
        %1116 = vmatpush1.msra.mxu0 %v1100
        %1117 = vmatprep.subr.mxu0 0.0
        %1118 = vmatpush1.msra.mxu0 %v1101
        %1119 = vmatprep.subr.mxu0 0.0
        %1120 = vmatpush1.msra.mxu0 %v1102
        %1121 = vmatprep.subr.mxu0 0.0
        %1122 = vmatpush1.msra.mxu0 0.0
        %1123 = vmatprep.subr.mxu0 0.0
        %1124 = vmatpush1.msra.mxu0 0.0
        %1125 = vmatprep.subr.mxu0 0.0
        %1126 = vmatpush1.msra.mxu0 0.0
        %1127 = vmatprep.subr.mxu0 0.0
        %1128 = vmatpush1.msra.mxu0 0.0
        %1129 = vmatprep.subr.mxu0 0.0
        %1130 = vmatpush1.msra.mxu0 0.0
        %1131 = vmatprep.subr.mxu0 0.0
        %1132 = vmatpush1.msra.mxu0 0.0
        %1133 = vmatprep.subr.mxu0 0.0
        %1134 = vmatpush1.msra.mxu0 0.0
        %1135 = vmatprep.subr.mxu0 0.0
        %1136 = vmatpush1.msra.mxu0 0.0
        %1137 = vmatprep.subr.mxu0 0.0
        %1138 = vmatpush1.msra.mxu0 0.0
        %1139 = vmatprep.subr.mxu0 0.0
        %1140 = vmatpush1.msra.mxu0 0.0
        %1141 = vmatprep.subr.mxu0 0.0
        %1142 = vmatpush1.msra.mxu0 0.0
        %1143 = vmatprep.subr.mxu0 0.0
        %1144 = vmatpush1.msra.mxu0 0.0
        %1145 = vmatprep.subr.mxu0 0.0
        %1146 = vmatpush1.msra.mxu0 0.0
        %1147 = vmatprep.subr.mxu0 0.0
        %1148 = vmatpush1.msra.mxu0 0.0
        %1149 = vmatprep.subr.mxu0 0.0
        %1150 = vmatpush1.msra.mxu0 0.0
        %1151 = vmatprep.subr.mxu0 0.0
        %1152 = vmatpush1.msra.mxu0 0.0
        %1153 = vmatprep.subr.mxu0 0.0
        %1154 = vmatpush1.msra.mxu0 0.0
        %1155 = vmatprep.subr.mxu0 0.0
        %1156 = vmatpush1.msra.mxu0 0.0
        %1157 = vmatprep.subr.mxu0 0.0
        %1158 = vmatpush1.msra.mxu0 0.0
        %1159 = vmatprep.subr.mxu0 0.0
        %1160 = vmatpush1.msra.mxu0 0.0
        %1161 = vmatprep.subr.mxu0 0.0
        %1162 = vmatpush1.msra.mxu0 0.0
        %1163 = vmatprep.subr.mxu0 0.0
        %1164 = vmatpush1.msra.mxu0 0.0
        %1165 = vmatprep.subr.mxu0 0.0
        %1166 = vmatpush1.msra.mxu0 0.0
        %1167 = vmatprep.subr.mxu0 0.0
        %1168 = vmatpush1.msra.mxu0 0.0
        %1169 = vmatprep.subr.mxu0 0.0
        %1170 = vmatpush1.msra.mxu0 0.0
        %1171 = vmatprep.subr.mxu0 0.0
        %1172 = vmatpush1.msra.mxu0 0.0
        %1173 = vmatprep.subr.mxu0 0.0
        %1174 = vmatpush1.msra.mxu0 0.0
        %1175 = vmatprep.subr.mxu0 0.0
        %1176 = vmatpush1.msra.mxu0 0.0
        %1177 = vmatprep.mubr.f32.mxu0 0.0
        %1178 = vmatmul.mubr.f32.gmra.mrb[0].mxu0 %v1111
        %v1179 = vpop.f32.mrb[0].mxu0
        %v1180 = vadd.f32 %v1108, %v1179
        %v1181 = vpop.f32.mrb[0].mxu0
        %1182 = vdwg.mxu0
        %v1183 = vtanh.pop %v1180
        %v1184 = vxor.u32 %v1180, 2147483648
        %v1185 = vmul.f32 %v1184, 1.442695
        %v1186 = vpow.pop %v1185
        %v1187 = vadd.f32 %v1186, 1.0
        %v1188 = vrcp.pop %v1187
        %v1189 = vmul.f32 1.0, %v1188
        %v1190 = vadd.f32 %v1183, %v1097
        %1192 = vrot.lane.b32.xlu0 %v1189, 96
        %v1193 = vpop.permute.xlu0 %1192
        %v1195 = vmul.f32 %v1190, %v1193
        %s1196 = scalar_lea.vmem %s309, 24 [#allocation4]
        %1197 = vst.msk [vmem:[%s1196] sm:$0xff] %vm342, %v1195
        %1198 = vst.msk [vmem:[#allocation2] sm:$0xff] %vm342, %v1195
        %s1199 = sand.u32 %s160, 1
        %s1200 = sand.u32 %s160, 1
        %s1201 = smul.addr %s1200, 32
        %s1202 = scalar_lea.vmem [#allocation4], %s1201
        // Predicated region
        $region83: #{rhn_forward.1} parent=73 // pred_check
          %p1203 = pneg %p170
        $region84: #{rhn_forward.1} parent=73 // pred_check_branch
          %1205 = sbr.rel (%p1203) target = $region86
        $region85: #{rhn_forward.1} parent=73 // pred_region
          %s1206 = smul.u32 4, %s21
          %s1207 = smul.addr %s1206, 2
          %s1208 = sadd.s32 %s20, %s1207
          %s1209 = smul.addr %s1208, 8
          %s1210 = scalar_lea.vmem %s5, %s1209
          // Predicated region
          $region87: #{rhn_forward.1} parent=85 // pred_check
            _
          $region88: #{rhn_forward.1} parent=85 // pred_check_branch
            %1212 = sbr.rel (0) target = $region90
          $region89: #{rhn_forward.1} parent=85 // pred_region
            // Predicated region
            $region91: #{rhn_forward.1} parent=89 // pred_check
              _
            $region92: #{rhn_forward.1} parent=89 // pred_check_branch
              %1214 = sbr.rel (0) target = $region94
            $region93: #{rhn_forward.1} parent=89 // pred_region
              // Predicated region
              $region106: #{rhn_forward.1} parent=93 // pred_check
                _
              $region107: #{rhn_forward.1} parent=93 // pred_check_branch
                %1235 = sbr.rel (0) target = $region109
              $region108: #{rhn_forward.1} parent=93 // pred_region
                loop: start=0, step=1, limit=1
                $region110: #{rhn_forward.1} parent=108 // loop_pre_header
                  _
                $region111: #{rhn_forward.1} parent=108 // loop_header
                  %s1237 = sphi 0, %s1241
                  %p1238 = scmp.ge.s32.totalorder %s1237, 1
                  %s1242 = sphi %s1202, %s1202
                  %s1243 = sphi %s1210, %s1210
                $region112: #{rhn_forward.1} parent=108 // loop_header_branch
                  %1240 = sbr.rel (%p1238) target = $region116
                $region113: #{rhn_forward.1} parent=108 // loop_body
                  %v1244 = vld [vmem:[%s1242] sm:$0xff]
                  %1245 = vst [vmem:[%s1243] sm:$0xff] %v1244
                  %v1246 = vld [vmem:[%s1242 + $0x8] sm:$0xff]
                  %1247 = vst [vmem:[%s1243 + $0x10] sm:$0xff] %v1246
                  %v1248 = vld [vmem:[%s1242 + $0x10] sm:$0xff]
                  %1249 = vst [vmem:[%s1243 + $0x20] sm:$0xff] %v1248
                  %v1250 = vld [vmem:[%s1242 + $0x18] sm:$0xff]
                  %1251 = vst [vmem:[%s1243 + $0x30] sm:$0xff] %v1250
                $region114: #{rhn_forward.1} parent=108 // loop_footer
                  %s1241 = sadd.s32 1, %s1237
                $region115: #{rhn_forward.1} parent=108 // loop_footer_branch
                  %1236 = sbr.rel target = $region111
                $region116: #{rhn_forward.1} parent=108 // loop_exit
                  _
              $region109: #{rhn_forward.1} parent=93 // pred_fallthru
                _
              // Predicated region
              $region117: #{rhn_forward.1} parent=93 // pred_check
                _
              $region118: #{rhn_forward.1} parent=93 // pred_check_branch
                %1253 = sbr.rel target = $region120
              $region119: #{rhn_forward.1} parent=93 // pred_region
                _
              $region120: #{rhn_forward.1} parent=93 // pred_fallthru
                _
            $region94: #{rhn_forward.1} parent=89 // pred_fallthru
              _
            // Predicated region
            $region95: #{rhn_forward.1} parent=89 // pred_check
              _
            $region96: #{rhn_forward.1} parent=89 // pred_check_branch
              %1216 = sbr.rel target = $region98
            $region97: #{rhn_forward.1} parent=89 // pred_region
              loop: start=0, step=1, limit=1
              $region99: #{rhn_forward.1} parent=97 // loop_pre_header
                _
              $region100: #{rhn_forward.1} parent=97 // loop_header
                %s1219 = sphi 0, %s1223
                %p1220 = scmp.ge.s32.totalorder %s1219, 1
                %s1224 = sphi %s1202, %s1202
                %s1225 = sphi %s1210, %s1210
              $region101: #{rhn_forward.1} parent=97 // loop_header_branch
                %1222 = sbr.rel (%p1220) target = $region105
              $region102: #{rhn_forward.1} parent=97 // loop_body
                %v1226 = vld [vmem:[%s1224] sm:$0xff]
                %1227 = vst [vmem:[%s1225] sm:$0xff] %v1226
                %v1228 = vld [vmem:[%s1224 + $0x8] sm:$0xff]
                %1229 = vst [vmem:[%s1225 + $0x10] sm:$0xff] %v1228
                %v1230 = vld [vmem:[%s1224 + $0x10] sm:$0xff]
                %1231 = vst [vmem:[%s1225 + $0x20] sm:$0xff] %v1230
                %v1232 = vld [vmem:[%s1224 + $0x18] sm:$0xff]
                %1233 = vst [vmem:[%s1225 + $0x30] sm:$0xff] %v1232
              $region103: #{rhn_forward.1} parent=97 // loop_footer
                %s1223 = sadd.s32 1, %s1219
              $region104: #{rhn_forward.1} parent=97 // loop_footer_branch
                %1218 = sbr.rel target = $region100
              $region105: #{rhn_forward.1} parent=97 // loop_exit
                _
            $region98: #{rhn_forward.1} parent=89 // pred_fallthru
              _
          $region90: #{rhn_forward.1} parent=85 // pred_fallthru
            _
          %1254 = vnop
        $region86: #{rhn_forward.1} parent=73 // pred_fallthru
          _
      $region74: #{rhn_forward.1} parent=5 // pred_fallthru
        _
      %p1255 = scmp.le.s32.totalorder 2, %s11
      // Predicated region
      $region121: #{rhn_forward.1} parent=5 // pred_check
        %p1256 = pneg %p1255
      $region122: #{rhn_forward.1} parent=5 // pred_check_branch
        %1258 = sbr.rel (%p1256) target = $region124
      $region123: #{rhn_forward.1} parent=5 // pred_region
        %s1259 = ssub.s32 %s11, 2
        // Predicated region
        $region125: #{rhn_forward.1} parent=123 // pred_check
          %p1260 = pneg %p176
        $region126: #{rhn_forward.1} parent=123 // pred_check_branch
          %1262 = sbr.rel (%p1260) target = $region128
        $region127: #{rhn_forward.1} parent=123 // pred_region
          %s1263 = sand.u32 %s161, 1
          %s1264 = sand.u32 %s161, 1
          %s1265 = smul.addr %s1264, 32
          %s1266 = scalar_lea.vmem [#allocation4], %s1265
        $region128: #{rhn_forward.1} parent=123 // pred_fallthru
          _
      $region124: #{rhn_forward.1} parent=5 // pred_fallthru
        _
    $region6: #{rhn_forward.1} parent=1 // loop_footer
      %s15 = sadd.s32 1, %s11
    $region7: #{rhn_forward.1} parent=1 // loop_footer_branch
      %10 = sbr.rel target = $region3
    $region8: #{rhn_forward.1} parent=1 // loop_exit
      _

</llo_original>
